<compile_context>
chip_gen: v5e
topology: v5e:2x2
jax: 0.10.0
libtpu: 0.0.40
codegen_flags: <defaults>
</compile_context>

<pallas_src>
import functools

import jax
import jax.numpy as jnp
from jax.experimental import pallas as pl
from jax.experimental.pallas import tpu as pltpu

BN_EPS = 1e-5
LANE = 128
_MIB = 1024 * 1024


# ----------------------------------------------------------------------------- utils
def _round_up(x, m):
    return (x + m - 1) // m * m


def _pad_to(a, shape):
    return jnp.pad(a, [(0, t - s) for s, t in zip(a.shape, shape)])


def _vmem_limit_bytes():
    """Generation-aware scoped-VMEM budget: ~3/4 of physical, capped at 96 MiB
    (v5e/v6e: 128 MiB physical -> 96 MiB; v7x: 64 MiB physical -> 48 MiB)."""
    try:
        cap = int(pltpu.get_tpu_info().vmem_capacity_bytes)
    except Exception:
        cap = 64 * _MIB           # conservative fallback (v7x per-core size)
    if cap <= 0:
        cap = 64 * _MIB
    return max(32 * _MIB, min((cap * 3) // 4, 96 * _MIB))


def _pick_div_tile(total, target, prefer_split=True):
    """Largest divisor of `total` that is <= target, preferring multiples of 16
    (bf16-native sublane tiling), falling back to multiples of 8.

    `total` is always a multiple of 8 here, so the search succeeds (worst case 8:
    many small steps, but never one giant unpipelined block / VMEM blow-up).
    With prefer_split the tile is capped so the grid has >= 2 steps (v7x megacore,
    pipelining)."""
    target = max(8, min(target, total))
    if prefer_split and total >= 16:
        target = max(8, min(target, total // 2))
    for step in (16, 8):
        d = (target // step) * step
        while d >= step:
            if total % d == 0:
                return d
            d -= step
    return total


def _row_tile_from_budget(total, per_row_bytes, vmem_limit, max_tile, prefer_split=True):
    """Channel-aware tile: keep the per-step working set within ~70% of the budget."""
    t = int((vmem_limit * 7 // 10) // max(int(per_row_bytes), 1))
    t = max(8, min(max_tile, t))
    return _pick_div_tile(total, t, prefer_split)


def _fold_bn(partial_stats, gamma, beta, count):
    """Reduce per-tile (sum, sumsq) partials -> per-channel affine scale/shift (f32).

    TODO(synk): E[x^2]-mean^2 can cancel for channels with huge mean / tiny variance;
    a shifted second moment would be more robust for extreme statistics."""
    s = jnp.sum(partial_stats[:, 0, :], axis=0)
    sq = jnp.sum(partial_stats[:, 1, :], axis=0)
    mean = s / count
    var = jnp.maximum(sq / count - mean * mean, 0.0)      # biased variance
    inv = jax.lax.rsqrt(var + BN_EPS)
    scale = gamma * inv
    shift = beta - mean * scale
    return scale.reshape(1, -1), shift.reshape(1, -1)


# --------------------------------------------------------------------------- kernels
def _write_stats(stats_ref, y):
    """Per-channel partial sum / sum-of-squares of the f32 accumulator (no concat)."""
    stats_ref[:, 0:1, :] = jnp.sum(y, axis=0, keepdims=True)[None]
    stats_ref[:, 1:2, :] = jnp.sum(y * y, axis=0, keepdims=True)[None]


def _stage1_kernel(x_ref, w_ref, y_ref, stats_ref):
    """conv1 (1x1): y = x @ w1 (bf16 in / f32 acc) + BN1 partials; store y1 as bf16."""
    y = jnp.dot(x_ref[...], w_ref[...], preferred_element_type=jnp.float32)
    _write_stats(stats_ref, y)
    y_ref[...] = y.astype(y_ref.dtype)


def _stage2_kernel(y1_ref, lh_ref, rh_ref, sc_ref, sh_ref, w2_ref, y2_ref, stats_ref,
                   *, ksize, tl, seq_len, compute_dtype):
    """BN1 (folded) + ReLU, conv2 over a row tile with an 8-row halo on each side.

    Taps are extracted from the haloed slab with pltpu.roll + aligned slices,
    masked at sequence boundaries, lane-concatenated and multiplied by w2 reshaped
    to (K*Cmid, Cmid) in ONE MXU matmul.  BN2 partials from the f32 accumulator,
    y2 stored bf16."""
    pad = ksize // 2
    l = pl.program_id(1)
    row0 = l * tl

    def bn_relu(v):
        return jnp.maximum(v.astype(jnp.float32) * sc_ref[...] + sh_ref[...], 0.0)

    y = bn_relu(y1_ref[0])                  # (tl, C) f32
    lh = bn_relu(lh_ref[0])                 # (8, C)  f32 (clamped fetch; masked below)
    rh = bn_relu(rh_ref[0])                 # (8, C)  f32
    yx = jnp.concatenate([lh, y, rh], axis=0)          # rows row0-8 .. row0+tl+7
    n_ext = tl + 16

    pos = row0 + jax.lax.broadcasted_iota(jnp.int32, (tl, 1), 0)
    taps = []
    for k in range(ksize):                              # static unroll
        off = k - pad
        s0 = 8 + off                                    # start row of tap k inside yx
        if s0 == 8:
            tap = y
        else:
            tap = pltpu.roll(yx, shift=(-s0) % n_ext, axis=0)[0:tl, :]
        valid = (pos + off >= 0) & (pos + off < seq_len)
        taps.append(jnp.where(valid, tap, 0.0))
    cat = jnp.concatenate(taps, axis=1).astype(compute_dtype)     # (tl, K*C) bf16
    acc = jnp.dot(cat, w2_ref[...], preferred_element_type=jnp.float32)
    _write_stats(stats_ref, acc)
    y2_ref[0] = acc.astype(y2_ref.dtype)


def _stage3_kernel(y2_ref, sc_ref, sh_ref, w_ref, y3_ref, stats_ref, *, compute_dtype):
    """BN2 + ReLU, conv3 (1x1) + BN3 partials; store y3 as bf16."""
    y = jnp.maximum(y2_ref[...].astype(jnp.float32) * sc_ref[...] + sh_ref[...], 0.0)
    y3 = jnp.dot(y.astype(compute_dtype), w_ref[...],
                 preferred_element_type=jnp.float32)
    _write_stats(stats_ref, y3)
    y3_ref[...] = y3.astype(y3_ref.dtype)


def _stage4_kernel(y3_ref, x_ref, sc_ref, sh_ref, out_ref):
    """BN3 + identity residual (f32 x, buffer aliased to the output) + final ReLU."""
    out_ref[...] = jnp.maximum(
        y3_ref[...].astype(jnp.float32) * sc_ref[...] + sh_ref[...] + x_ref[...], 0.0)


# --------------------------------------------------------------------------- wrapper
def prepare_params(raw_params, compute_dtype=jnp.bfloat16, lane=LANE):
    """Pad channel dims to multiples of `lane`, pre-cast conv weights to bf16 and
    reshape conv2 to (K*Cmid, Cmid) for the single lane-concatenated matmul.

    raw_params (kernel layout, f32):
      w1 (Cin, Cmid), w2 (K, Cmid, Cmid), w3 (Cmid, Cout),
      g1/b1 (Cmid,), g2/b2 (Cmid,), g3/b3 (Cout,)
    Padded gamma/beta are zero, so padded channels stay exactly zero end to end."""
    cin, cmid = raw_params['w1'].shape
    ksize = raw_params['w2'].shape[0]
    cout = raw_params['w3'].shape[1]
    ci_p, cm_p, co_p = (_round_up(c, lane) for c in (cin, cmid, cout))
    f32 = jnp.float32
    w2_p = _pad_to(raw_params['w2'].astype(compute_dtype), (ksize, cm_p, cm_p))
    return dict(
        w1=_pad_to(raw_params['w1'].astype(compute_dtype), (ci_p, cm_p)),
        w2=w2_p.reshape(ksize * cm_p, cm_p),
        w3=_pad_to(raw_params['w3'].astype(compute_dtype), (cm_p, co_p)),
        g1=_pad_to(raw_params['g1'].astype(f32), (cm_p,)),
        b1=_pad_to(raw_params['b1'].astype(f32), (cm_p,)),
        g2=_pad_to(raw_params['g2'].astype(f32), (cm_p,)),
        b2=_pad_to(raw_params['b2'].astype(f32), (cm_p,)),
        g3=_pad_to(raw_params['g3'].astype(f32), (co_p,)),
        b3=_pad_to(raw_params['b3'].astype(f32), (co_p,)),
    )


def bottleneck1d(x_nlc, params, *, compute_dtype=jnp.bfloat16):
    """x_nlc: (N, L, Cin) f32, Cin == 4*out_planes (identity residual, stride 1).

    params: output of prepare_params().  Returns (N, L, Cin) f32."""
    n, seq_len, cin = x_nlc.shape
    ci_p, cm_p = params['w1'].shape
    co_p = params['w3'].shape[1]
    ksize = params['w2'].shape[0] // cm_p
    pad = ksize // 2
    assert ci_p == co_p, "identity residual needs in_planes == 4*out_planes"
    assert seq_len % 8 == 0, "seq_len must be a multiple of 8"
    assert pad <= 8, "kernel_size > 17 would need a deeper halo"

    rows = n * seq_len
    f32 = jnp.float32
    bf = compute_dtype
    vmem_limit = _vmem_limit_bytes()

    # Channel-aware row tiles (per-row bytes include the 2x double-buffer factor).
    per_row_134 = 2 * max(2 * ci_p + 2 * cm_p,               # stage 1 (bf16 in/out)
                          2 * cm_p + 2 * co_p,               # stage 3 (bf16 in/out)
                          2 * co_p + 4 * ci_p + 4 * co_p)    # stage 4 (f32 x + f32 out)
    tr = _row_tile_from_budget(rows, per_row_134, vmem_limit, max_tile=4096)
    n_row_tiles = rows // tr
    # Stage 2 also holds the haloed slab + K f32 taps + the lane-concat in VMEM.
    per_row_2 = cm_p * (24 + 10 * ksize)
    tl = _row_tile_from_budget(seq_len, per_row_2, vmem_limit, max_tile=1024,
                               prefer_split=(n == 1))
    n_ltiles = seq_len // tl
    n8 = tl // 8
    nl8 = seq_len // 8

    cp1 = pltpu.CompilerParams(dimension_semantics=("parallel",),
                               vmem_limit_bytes=vmem_limit)
    cp2 = pltpu.CompilerParams(dimension_semantics=("parallel", "parallel"),
                               vmem_limit_bytes=vmem_limit)

    def row_spec(c):
        return pl.BlockSpec((tr, c), lambda i: (i, 0))

    def resident(shape):
        return pl.BlockSpec(shape, lambda *_: (0,) * len(shape))

    def stats_spec(c):
        return pl.BlockSpec((1, 2, c), lambda i: (i, 0, 0))

    # Channel-pad the input once; f32 copy feeds the residual, bf16 copy feeds conv1.
    x2d = _pad_to(x_nlc.reshape(rows, cin).astype(f32), (rows, ci_p))
    x2d_bf = x2d.astype(bf)

    # ---- stage 1: conv1 (1x1) + BN1 partials, tiled over rows ----
    y1_2d, st1 = pl.pallas_call(
        _stage1_kernel,
        grid=(n_row_tiles,),
        in_specs=[row_spec(ci_p), resident((ci_p, cm_p))],
        out_specs=[row_spec(cm_p), stats_spec(cm_p)],
        out_shape=[jax.ShapeDtypeStruct((rows, cm_p), bf),
                   jax.ShapeDtypeStruct((n_row_tiles, 2, cm_p), f32)],
        compiler_params=cp1,
        cost_estimate=pl.CostEstimate(
            flops=2 * rows * ci_p * cm_p, transcendentals=0,
            bytes_accessed=2 * rows * (ci_p + cm_p) + 2 * ci_p * cm_p),
    )(x2d_bf, params['w1'])
    sc1, sh1 = _fold_bn(st1, params['g1'], params['b1'], rows)

    # ---- stage 2: BN1+ReLU + conv2 (halo + single deep matmul) + BN2 partials ----
    y1_nlc = y1_2d.reshape(n, seq_len, cm_p)
    y2_nlc, st2 = pl.pallas_call(
        functools.partial(_stage2_kernel, ksize=ksize, tl=tl, seq_len=seq_len,
                          compute_dtype=bf),
        grid=(n, n_ltiles),
        in_specs=[
            pl.BlockSpec((1, tl, cm_p), lambda b, l: (b, l, 0)),
            # 8-row left/right halo blocks (clamped at sequence edges, masked in-kernel)
            pl.BlockSpec((1, 8, cm_p),
                         lambda b, l: (b, jnp.maximum(l * n8 - 1, 0), 0)),
            pl.BlockSpec((1, 8, cm_p),
                         lambda b, l: (b, jnp.minimum((l + 1) * n8, nl8 - 1), 0)),
            resident((1, cm_p)), resident((1, cm_p)),
            resident((ksize * cm_p, cm_p)),
        ],
        out_specs=[
            pl.BlockSpec((1, tl, cm_p), lambda b, l: (b, l, 0)),
            pl.BlockSpec((1, 2, cm_p), lambda b, l: (b * n_ltiles + l, 0, 0)),
        ],
        out_shape=[jax.ShapeDtypeStruct((n, seq_len, cm_p), bf),
                   jax.ShapeDtypeStruct((n * n_ltiles, 2, cm_p), f32)],
        compiler_params=cp2,
        cost_estimate=pl.CostEstimate(
            flops=2 * rows * ksize * cm_p * cm_p, transcendentals=0,
            bytes_accessed=4 * rows * cm_p + 2 * ksize * cm_p * cm_p),
    )(y1_nlc, y1_nlc, y1_nlc, sc1, sh1, params['w2'])
    sc2, sh2 = _fold_bn(st2, params['g2'], params['b2'], rows)

    # ---- stage 3: BN2+ReLU + conv3 (1x1) + BN3 partials, tiled over rows ----
    y2_2d = y2_nlc.reshape(rows, cm_p)
    y3_2d, st3 = pl.pallas_call(
        functools.partial(_stage3_kernel, compute_dtype=bf),
        grid=(n_row_tiles,),
        in_specs=[row_spec(cm_p), resident((1, cm_p)), resident((1, cm_p)),
                  resident((cm_p, co_p))],
        out_specs=[row_spec(co_p), stats_spec(co_p)],
        out_shape=[jax.ShapeDtypeStruct((rows, co_p), bf),
                   jax.ShapeDtypeStruct((n_row_tiles, 2, co_p), f32)],
        compiler_params=cp1,
        cost_estimate=pl.CostEstimate(
            flops=2 * rows * cm_p * co_p, transcendentals=0,
            bytes_accessed=2 * rows * (cm_p + co_p) + 2 * cm_p * co_p),
    )(y2_2d, sc2, sh2, params['w3'])
    sc3, sh3 = _fold_bn(st3, params['g3'], params['b3'], rows)

    # ---- stage 4: BN3 + identity residual + final ReLU (output aliases x2d) ----
    out_2d = pl.pallas_call(
        _stage4_kernel,
        grid=(n_row_tiles,),
        in_specs=[row_spec(co_p), row_spec(ci_p),
                  resident((1, co_p)), resident((1, co_p))],
        out_specs=row_spec(co_p),
        out_shape=jax.ShapeDtypeStruct((rows, co_p), f32),
        compiler_params=cp1,
        input_output_aliases={1: 0},
        cost_estimate=pl.CostEstimate(
            flops=3 * rows * co_p, transcendentals=0,
            bytes_accessed=10 * rows * co_p),
    )(y3_2d, x2d, sc3, sh3)

    return out_2d[:, :cin].reshape(n, seq_len, cin)


# ------------------------------------------------------------------------- reference
def bottleneck1d_reference(x_nlc, raw_params, compute_dtype=jnp.bfloat16):
    """Pure-JAX reference mirroring the PyTorch forward (training-mode BN) with
    bf16-input / f32-accumulate matmuls and f32 BN / intermediates."""
    x = x_nlc.astype(jnp.float32)
    seq_len = x.shape[1]

    def bn(y, gamma, beta):
        mean = jnp.mean(y, axis=(0, 1), keepdims=True)
        var = jnp.mean((y - mean) ** 2, axis=(0, 1), keepdims=True)
        return ((y - mean) * jax.lax.rsqrt(var + BN_EPS) * gamma.reshape(1, 1, -1)
                + beta.reshape(1, 1, -1))

    def dot(a, w):
        return jnp.einsum('nlc,cd->nld', a.astype(compute_dtype),
                          w.astype(compute_dtype),
                          preferred_element_type=jnp.float32)

    y = jnp.maximum(bn(dot(x, raw_params['w1']), raw_params['g1'], raw_params['b1']), 0.0)
    ksize = raw_params['w2'].shape[0]
    pad = ksize // 2
    y_pad = jnp.pad(y, ((0, 0), (pad, pad), (0, 0)))
    y2 = sum(dot(y_pad[:, k:k + seq_len, :], raw_params['w2'][k]) for k in range(ksize))
    y2 = jnp.maximum(bn(y2, raw_params['g2'], raw_params['b2']), 0.0)
    y3 = bn(dot(y2, raw_params['w3']), raw_params['g3'], raw_params['b3'])
    return jnp.maximum(y3 + x, 0.0)


# ------------------------------------------------------------------------------ main
if __name__ == "__main__":
    # Small shapes consistent with the module: identity residual requires
    # in_planes == out_planes * expansion and stride == 1.
    N, L = 2, 16
    out_planes = 4
    in_planes = out_planes * 4      # 16
    K = 3                           # kernel_size for conv2

    key = jax.random.PRNGKey(0)
    ks = jax.random.split(key, 10)

    # Input in PyTorch layout (N, C, L).
    x_ncl = jax.random.normal(ks[0], (N, in_planes, L), jnp.float32)

    # PyTorch-shaped weights, then re-laid-out for the kernel.
    w1_t = 0.1 * jax.random.normal(ks[1], (out_planes, in_planes, 1), jnp.float32)
    w2_t = 0.1 * jax.random.normal(ks[2], (out_planes, out_planes, K), jnp.float32)
    w3_t = 0.1 * jax.random.normal(ks[3], (4 * out_planes, out_planes, 1), jnp.float32)
    g1 = 1.0 + 0.1 * jax.random.normal(ks[4], (out_planes,), jnp.float32)
    b1 = 0.1 * jax.random.normal(ks[5], (out_planes,), jnp.float32)
    g2 = 1.0 + 0.1 * jax.random.normal(ks[6], (out_planes,), jnp.float32)
    b2 = 0.1 * jax.random.normal(ks[7], (out_planes,), jnp.float32)
    g3 = 1.0 + 0.1 * jax.random.normal(ks[8], (4 * out_planes,), jnp.float32)
    b3 = 0.1 * jax.random.normal(ks[9], (4 * out_planes,), jnp.float32)

    raw_params = dict(
        w1=jnp.transpose(w1_t[:, :, 0], (1, 0)),    # (Cin, Cmid)
        w2=jnp.transpose(w2_t, (2, 1, 0)),          # (K, Cmid, Cmid)
        w3=jnp.transpose(w3_t[:, :, 0], (1, 0)),    # (Cmid, Cout)
        g1=g1, b1=b1, g2=g2, b2=b2, g3=g3, b3=b3,
    )
    params = prepare_params(raw_params)             # pad channels to 128, bf16 weights

    # Layout: keep activations in (N, L, C) across the whole network; the
    # (N, C, L) <-> (N, L, C) transpose happens once at model input/output.
    x_nlc = jnp.transpose(x_ncl, (0, 2, 1))
    fwd = jax.jit(bottleneck1d)
    out_nlc = fwd(x_nlc, params)
    jax.block_until_ready(out_nlc)

    ref_nlc = bottleneck1d_reference(x_nlc, raw_params)
    # bf16 intermediate storage adds ~O(1e-2) absolute error on O(1) BN outputs.
    if not jnp.allclose(out_nlc, ref_nlc, rtol=3e-2, atol=3e-2):
        max_err = float(jnp.max(jnp.abs(out_nlc - ref_nlc)))
        raise AssertionError(f"kernel/reference mismatch, max abs err {max_err}")

    out_ncl = jnp.transpose(out_nlc, (0, 2, 1))     # back to PyTorch layout
    jax.block_until_ready(out_ncl)
    print("KERNEL_OK")
</pallas_src>

<mosaic_0001>
module attributes {stable_mosaic.version = 11 : i64} {
  func.func @_stage1_kernel(%arg0: i32, %arg1: memref<16x128xbf16, #tpu.memory_space<vmem>>, %arg2: memref<128x128xbf16, #tpu.memory_space<vmem>>, %arg3: memref<16x128xbf16, #tpu.memory_space<vmem>>, %arg4: memref<1x2x128xf32, #tpu.memory_space<vmem>>) attributes {dimension_semantics = [#tpu.dimension_semantics<parallel>], iteration_bounds = array<i64: 2>, scalar_prefetch = 0 : i64, scratch_operands = 0 : i64, tpu.core_type = #tpu.core_type<tc>, window_params = [{transform_indices = @transform_0, window_bounds = array<i64: 16, 128>}, {pipeline_mode = #tpu.pipeline_mode<synchronous>, transform_indices = @transform_1, window_bounds = array<i64: 128, 128>}, {transform_indices = @transform_2, window_bounds = array<i64: 16, 128>}, {transform_indices = @transform_3, window_bounds = array<i64: 1, 2, 128>}]} {
    %c0 = arith.constant 0 : index
    %c0_0 = arith.constant 0 : index
    %0 = vector.load %arg1[%c0, %c0_0] : memref<16x128xbf16, #tpu.memory_space<vmem>>, vector<16x128xbf16>
    %c0_1 = arith.constant 0 : index
    %c0_2 = arith.constant 0 : index
    %1 = vector.load %arg2[%c0_1, %c0_2] : memref<128x128xbf16, #tpu.memory_space<vmem>>, vector<128x128xbf16>
    %cst = arith.constant dense<0.000000e+00> : vector<16x128xf32>
    %2 = tpu.matmul %0, %1, %cst {dimension_numbers = #tpu.dot_dimension_numbers<[1], [0], [0], [1], [0, 0, 1, 1], [], []>} : vector<16x128xbf16>, vector<128x128xbf16>, vector<16x128xf32> -> vector<16x128xf32>
    %cst_3 = arith.constant dense<0.000000e+00> : vector<128xf32>
    %3 = vector.multi_reduction <add>, %2, %cst_3 [0] : vector<16x128xf32> to vector<128xf32>
    %4 = vector.shape_cast %3 : vector<128xf32> to vector<1x128xf32>
    %5 = vector.shape_cast %4 : vector<1x128xf32> to vector<1x1x128xf32>
    %c0_4 = arith.constant 0 : index
    %c0_5 = arith.constant 0 : index
    %c0_6 = arith.constant 0 : index
    %6 = vector.load %arg4[%c0_4, %c0_5, %c0_6] : memref<1x2x128xf32, #tpu.memory_space<vmem>>, vector<1x1x128xf32>
    tpu.vector_store %arg4[%c0_4, %c0_5, %c0_6], %5 {strides = array<i32>} : memref<1x2x128xf32, #tpu.memory_space<vmem>>, vector<1x1x128xf32>,
    %7 = arith.mulf %2, %2 : vector<16x128xf32>
    %cst_7 = arith.constant dense<0.000000e+00> : vector<128xf32>
    %8 = vector.multi_reduction <add>, %7, %cst_7 [0] : vector<16x128xf32> to vector<128xf32>
    %9 = vector.shape_cast %8 : vector<128xf32> to vector<1x128xf32>
    %10 = vector.shape_cast %9 : vector<1x128xf32> to vector<1x1x128xf32>
    %c0_8 = arith.constant 0 : index
    %c1 = arith.constant 1 : index
    %c0_9 = arith.constant 0 : index
    %11 = vector.load %arg4[%c0_8, %c1, %c0_9] : memref<1x2x128xf32, #tpu.memory_space<vmem>>, vector<1x1x128xf32>
    tpu.vector_store %arg4[%c0_8, %c1, %c0_9], %10 {strides = array<i32>} : memref<1x2x128xf32, #tpu.memory_space<vmem>>, vector<1x1x128xf32>,
    %12 = arith.truncf %2 : vector<16x128xf32> to vector<16x128xbf16>
    %c0_10 = arith.constant 0 : index
    %c0_11 = arith.constant 0 : index
    %13 = vector.load %arg3[%c0_10, %c0_11] : memref<16x128xbf16, #tpu.memory_space<vmem>>, vector<16x128xbf16>
    tpu.vector_store %arg3[%c0_10, %c0_11], %12 {strides = array<i32>} : memref<16x128xbf16, #tpu.memory_space<vmem>>, vector<16x128xbf16>,
    return
  }
  func.func @transform_0(%arg0: i32) -> (i32, i32) {
    %c0_i32 = arith.constant 0 : i32
    %c0_i32_0 = arith.constant 0 : i32
    return %arg0, %c0_i32 : i32, i32
  }
  func.func @transform_1(%arg0: i32) -> (i32, i32) {
    %c0_i32 = arith.constant 0 : i32
    %c0_i32_0 = arith.constant 0 : i32
    %c0_i32_1 = arith.constant 0 : i32
    return %c0_i32, %c0_i32_0 : i32, i32
  }
  func.func @transform_2(%arg0: i32) -> (i32, i32) {
    %c0_i32 = arith.constant 0 : i32
    %c0_i32_0 = arith.constant 0 : i32
    return %arg0, %c0_i32 : i32, i32
  }
  func.func @transform_3(%arg0: i32) -> (i32, i32, i32) {
    %c0_i32 = arith.constant 0 : i32
    %c0_i32_0 = arith.constant 0 : i32
    %c0_i32_1 = arith.constant 0 : i32
    return %arg0, %c0_i32, %c0_i32_0 : i32, i32, i32
  }
}

module attributes {stable_mosaic.version = 11 : i64} {
  func.func @_stage3_kernel(%arg0: i32, %arg1: memref<16x128xbf16, #tpu.memory_space<vmem>>, %arg2: memref<1x128xf32, #tpu.memory_space<vmem>>, %arg3: memref<1x128xf32, #tpu.memory_space<vmem>>, %arg4: memref<128x128xbf16, #tpu.memory_space<vmem>>, %arg5: memref<16x128xbf16, #tpu.memory_space<vmem>>, %arg6: memref<1x2x128xf32, #tpu.memory_space<vmem>>) attributes {dimension_semantics = [#tpu.dimension_semantics<parallel>], iteration_bounds = array<i64: 2>, scalar_prefetch = 0 : i64, scratch_operands = 0 : i64, tpu.core_type = #tpu.core_type<tc>, window_params = [{transform_indices = @transform_0, window_bounds = array<i64: 16, 128>}, {pipeline_mode = #tpu.pipeline_mode<synchronous>, transform_indices = @transform_1, window_bounds = array<i64: 1, 128>}, {pipeline_mode = #tpu.pipeline_mode<synchronous>, transform_indices = @transform_2, window_bounds = array<i64: 1, 128>}, {pipeline_mode = #tpu.pipeline_mode<synchronous>, transform_indices = @transform_3, window_bounds = array<i64: 128, 128>}, {transform_indices = @transform_4, window_bounds = array<i64: 16, 128>}, {transform_indices = @transform_5, window_bounds = array<i64: 1, 2, 128>}]} {
    %c0 = arith.constant 0 : index
    %c0_0 = arith.constant 0 : index
    %0 = vector.load %arg1[%c0, %c0_0] : memref<16x128xbf16, #tpu.memory_space<vmem>>, vector<16x128xbf16>
    %1 = arith.extf %0 : vector<16x128xbf16> to vector<16x128xf32>
    %c0_1 = arith.constant 0 : index
    %c0_2 = arith.constant 0 : index
    %2 = vector.load %arg2[%c0_1, %c0_2] : memref<1x128xf32, #tpu.memory_space<vmem>>, vector<1x128xf32>
    %3 = vector.broadcast %2 : vector<1x128xf32> to vector<16x128xf32>
    %4 = arith.mulf %1, %3 : vector<16x128xf32>
    %c0_3 = arith.constant 0 : index
    %c0_4 = arith.constant 0 : index
    %5 = vector.load %arg3[%c0_3, %c0_4] : memref<1x128xf32, #tpu.memory_space<vmem>>, vector<1x128xf32>
    %6 = vector.broadcast %5 : vector<1x128xf32> to vector<16x128xf32>
    %7 = arith.addf %4, %6 : vector<16x128xf32>
    %cst = arith.constant 0.000000e+00 : f32
    %8 = vector.broadcast %cst : f32 to vector<16x128xf32>
    %9 = arith.maximumf %7, %8 : vector<16x128xf32>
    %10 = arith.truncf %9 : vector<16x128xf32> to vector<16x128xbf16>
    %c0_5 = arith.constant 0 : index
    %c0_6 = arith.constant 0 : index
    %11 = vector.load %arg4[%c0_5, %c0_6] : memref<128x128xbf16, #tpu.memory_space<vmem>>, vector<128x128xbf16>
    %cst_7 = arith.constant dense<0.000000e+00> : vector<16x128xf32>
    %12 = tpu.matmul %10, %11, %cst_7 {dimension_numbers = #tpu.dot_dimension_numbers<[1], [0], [0], [1], [0, 0, 1, 1], [], []>} : vector<16x128xbf16>, vector<128x128xbf16>, vector<16x128xf32> -> vector<16x128xf32>
    %cst_8 = arith.constant dense<0.000000e+00> : vector<128xf32>
    %13 = vector.multi_reduction <add>, %12, %cst_8 [0] : vector<16x128xf32> to vector<128xf32>
    %14 = vector.shape_cast %13 : vector<128xf32> to vector<1x128xf32>
    %15 = vector.shape_cast %14 : vector<1x128xf32> to vector<1x1x128xf32>
    %c0_9 = arith.constant 0 : index
    %c0_10 = arith.constant 0 : index
    %c0_11 = arith.constant 0 : index
    %16 = vector.load %arg6[%c0_9, %c0_10, %c0_11] : memref<1x2x128xf32, #tpu.memory_space<vmem>>, vector<1x1x128xf32>
    tpu.vector_store %arg6[%c0_9, %c0_10, %c0_11], %15 {strides = array<i32>} : memref<1x2x128xf32, #tpu.memory_space<vmem>>, vector<1x1x128xf32>,
    %17 = arith.mulf %12, %12 : vector<16x128xf32>
    %cst_12 = arith.constant dense<0.000000e+00> : vector<128xf32>
    %18 = vector.multi_reduction <add>, %17, %cst_12 [0] : vector<16x128xf32> to vector<128xf32>
    %19 = vector.shape_cast %18 : vector<128xf32> to vector<1x128xf32>
    %20 = vector.shape_cast %19 : vector<1x128xf32> to vector<1x1x128xf32>
    %c0_13 = arith.constant 0 : index
    %c1 = arith.constant 1 : index
    %c0_14 = arith.constant 0 : index
    %21 = vector.load %arg6[%c0_13, %c1, %c0_14] : memref<1x2x128xf32, #tpu.memory_space<vmem>>, vector<1x1x128xf32>
    tpu.vector_store %arg6[%c0_13, %c1, %c0_14], %20 {strides = array<i32>} : memref<1x2x128xf32, #tpu.memory_space<vmem>>, vector<1x1x128xf32>,
    %22 = arith.truncf %12 : vector<16x128xf32> to vector<16x128xbf16>
    %c0_15 = arith.constant 0 : index
    %c0_16 = arith.constant 0 : index
    %23 = vector.load %arg5[%c0_15, %c0_16] : memref<16x128xbf16, #tpu.memory_space<vmem>>, vector<16x128xbf16>
    tpu.vector_store %arg5[%c0_15, %c0_16], %22 {strides = array<i32>} : memref<16x128xbf16, #tpu.memory_space<vmem>>, vector<16x128xbf16>,
    return
  }
  func.func @transform_0(%arg0: i32) -> (i32, i32) {
    %c0_i32 = arith.constant 0 : i32
    %c0_i32_0 = arith.constant 0 : i32
    return %arg0, %c0_i32 : i32, i32
  }
  func.func @transform_1(%arg0: i32) -> (i32, i32) {
    %c0_i32 = arith.constant 0 : i32
    %c0_i32_0 = arith.constant 0 : i32
    %c0_i32_1 = arith.constant 0 : i32
    return %c0_i32, %c0_i32_0 : i32, i32
  }
  func.func @transform_2(%arg0: i32) -> (i32, i32) {
    %c0_i32 = arith.constant 0 : i32
    %c0_i32_0 = arith.constant 0 : i32
    %c0_i32_1 = arith.constant 0 : i32
    return %c0_i32, %c0_i32_0 : i32, i32
  }
  func.func @transform_3(%arg0: i32) -> (i32, i32) {
    %c0_i32 = arith.constant 0 : i32
    %c0_i32_0 = arith.constant 0 : i32
    %c0_i32_1 = arith.constant 0 : i32
    return %c0_i32, %c0_i32_0 : i32, i32
  }
  func.func @transform_4(%arg0: i32) -> (i32, i32) {
    %c0_i32 = arith.constant 0 : i32
    %c0_i32_0 = arith.constant 0 : i32
    return %arg0, %c0_i32 : i32, i32
  }
  func.func @transform_5(%arg0: i32) -> (i32, i32, i32) {
    %c0_i32 = arith.constant 0 : i32
    %c0_i32_0 = arith.constant 0 : i32
    %c0_i32_1 = arith.constant 0 : i32
    return %arg0, %c0_i32, %c0_i32_0 : i32, i32, i32
  }
}

module attributes {stable_mosaic.version = 11 : i64} {
  func.func @_stage4_kernel(%arg0: i32, %arg1: memref<16x128xbf16, #tpu.memory_space<vmem>>, %arg2: memref<16x128xf32, #tpu.memory_space<vmem>>, %arg3: memref<1x128xf32, #tpu.memory_space<vmem>>, %arg4: memref<1x128xf32, #tpu.memory_space<vmem>>, %arg5: memref<16x128xf32, #tpu.memory_space<vmem>>) attributes {dimension_semantics = [#tpu.dimension_semantics<parallel>], iteration_bounds = array<i64: 2>, scalar_prefetch = 0 : i64, scratch_operands = 0 : i64, tpu.core_type = #tpu.core_type<tc>, window_params = [{transform_indices = @transform_0, window_bounds = array<i64: 16, 128>}, {transform_indices = @transform_1, window_bounds = array<i64: 16, 128>}, {pipeline_mode = #tpu.pipeline_mode<synchronous>, transform_indices = @transform_2, window_bounds = array<i64: 1, 128>}, {pipeline_mode = #tpu.pipeline_mode<synchronous>, transform_indices = @transform_3, window_bounds = array<i64: 1, 128>}, {transform_indices = @transform_4, window_bounds = array<i64: 16, 128>}]} {
    %c0 = arith.constant 0 : index
    %c0_0 = arith.constant 0 : index
    %0 = vector.load %arg1[%c0, %c0_0] : memref<16x128xbf16, #tpu.memory_space<vmem>>, vector<16x128xbf16>
    %1 = arith.extf %0 : vector<16x128xbf16> to vector<16x128xf32>
    %c0_1 = arith.constant 0 : index
    %c0_2 = arith.constant 0 : index
    %2 = vector.load %arg3[%c0_1, %c0_2] : memref<1x128xf32, #tpu.memory_space<vmem>>, vector<1x128xf32>
    %3 = vector.broadcast %2 : vector<1x128xf32> to vector<16x128xf32>
    %4 = arith.mulf %1, %3 : vector<16x128xf32>
    %c0_3 = arith.constant 0 : index
    %c0_4 = arith.constant 0 : index
    %5 = vector.load %arg4[%c0_3, %c0_4] : memref<1x128xf32, #tpu.memory_space<vmem>>, vector<1x128xf32>
    %6 = vector.broadcast %5 : vector<1x128xf32> to vector<16x128xf32>
    %7 = arith.addf %4, %6 : vector<16x128xf32>
    %c0_5 = arith.constant 0 : index
    %c0_6 = arith.constant 0 : index
    %8 = vector.load %arg2[%c0_5, %c0_6] : memref<16x128xf32, #tpu.memory_space<vmem>>, vector<16x128xf32>
    %9 = arith.addf %7, %8 : vector<16x128xf32>
    %cst = arith.constant 0.000000e+00 : f32
    %10 = vector.broadcast %cst : f32 to vector<16x128xf32>
    %11 = arith.maximumf %9, %10 : vector<16x128xf32>
    %c0_7 = arith.constant 0 : index
    %c0_8 = arith.constant 0 : index
    %12 = vector.load %arg5[%c0_7, %c0_8] : memref<16x128xf32, #tpu.memory_space<vmem>>, vector<16x128xf32>
    tpu.vector_store %arg5[%c0_7, %c0_8], %11 {strides = array<i32>} : memref<16x128xf32, #tpu.memory_space<vmem>>, vector<16x128xf32>,
    return
  }
  func.func @transform_0(%arg0: i32) -> (i32, i32) {
    %c0_i32 = arith.constant 0 : i32
    %c0_i32_0 = arith.constant 0 : i32
    return %arg0, %c0_i32 : i32, i32
  }
  func.func @transform_1(%arg0: i32) -> (i32, i32) {
    %c0_i32 = arith.constant 0 : i32
    %c0_i32_0 = arith.constant 0 : i32
    return %arg0, %c0_i32 : i32, i32
  }
  func.func @transform_2(%arg0: i32) -> (i32, i32) {
    %c0_i32 = arith.constant 0 : i32
    %c0_i32_0 = arith.constant 0 : i32
    %c0_i32_1 = arith.constant 0 : i32
    return %c0_i32, %c0_i32_0 : i32, i32
  }
  func.func @transform_3(%arg0: i32) -> (i32, i32) {
    %c0_i32 = arith.constant 0 : i32
    %c0_i32_0 = arith.constant 0 : i32
    %c0_i32_1 = arith.constant 0 : i32
    return %c0_i32, %c0_i32_0 : i32, i32
  }
  func.func @transform_4(%arg0: i32) -> (i32, i32) {
    %c0_i32 = arith.constant 0 : i32
    %c0_i32_0 = arith.constant 0 : i32
    return %arg0, %c0_i32 : i32, i32
  }
}

module attributes {stable_mosaic.version = 11 : i64} {
  func.func @_stage2_kernel(%arg0: i32, %arg1: i32, %arg2: memref<1x16x128xbf16, #tpu.memory_space<vmem>>, %arg3: memref<1x8x128xbf16, #tpu.memory_space<vmem>>, %arg4: memref<1x8x128xbf16, #tpu.memory_space<vmem>>, %arg5: memref<1x128xf32, #tpu.memory_space<vmem>>, %arg6: memref<1x128xf32, #tpu.memory_space<vmem>>, %arg7: memref<384x128xbf16, #tpu.memory_space<vmem>>, %arg8: memref<1x16x128xbf16, #tpu.memory_space<vmem>>, %arg9: memref<1x2x128xf32, #tpu.memory_space<vmem>>) attributes {dimension_semantics = [#tpu.dimension_semantics<parallel>, #tpu.dimension_semantics<parallel>], iteration_bounds = array<i64: 2, 1>, scalar_prefetch = 0 : i64, scratch_operands = 0 : i64, tpu.core_type = #tpu.core_type<tc>, window_params = [{transform_indices = @transform_0, window_bounds = array<i64: 1, 16, 128>}, {transform_indices = @transform_1, window_bounds = array<i64: 1, 8, 128>}, {transform_indices = @transform_2, window_bounds = array<i64: 1, 8, 128>}, {pipeline_mode = #tpu.pipeline_mode<synchronous>, transform_indices = @transform_3, window_bounds = array<i64: 1, 128>}, {pipeline_mode = #tpu.pipeline_mode<synchronous>, transform_indices = @transform_4, window_bounds = array<i64: 1, 128>}, {pipeline_mode = #tpu.pipeline_mode<synchronous>, transform_indices = @transform_5, window_bounds = array<i64: 384, 128>}, {transform_indices = @transform_6, window_bounds = array<i64: 1, 16, 128>}, {transform_indices = @transform_7, window_bounds = array<i64: 1, 2, 128>}]} {
    %c16_i32 = arith.constant 16 : i32
    %0 = arith.muli %arg1, %c16_i32 : i32
    %c0 = arith.constant 0 : index
    %c0_0 = arith.constant 0 : index
    %c0_1 = arith.constant 0 : index
    %1 = vector.load %arg2[%c0, %c0_0, %c0_1] : memref<1x16x128xbf16, #tpu.memory_space<vmem>>, vector<1x16x128xbf16>
    %2 = vector.shape_cast %1 : vector<1x16x128xbf16> to vector<16x128xbf16>
    %3 = arith.extf %2 : vector<16x128xbf16> to vector<16x128xf32>
    %c0_2 = arith.constant 0 : index
    %c0_3 = arith.constant 0 : index
    %4 = vector.load %arg5[%c0_2, %c0_3] : memref<1x128xf32, #tpu.memory_space<vmem>>, vector<1x128xf32>
    %5 = vector.broadcast %4 : vector<1x128xf32> to vector<16x128xf32>
    %6 = arith.mulf %3, %5 : vector<16x128xf32>
    %c0_4 = arith.constant 0 : index
    %c0_5 = arith.constant 0 : index
    %7 = vector.load %arg6[%c0_4, %c0_5] : memref<1x128xf32, #tpu.memory_space<vmem>>, vector<1x128xf32>
    %8 = vector.broadcast %7 : vector<1x128xf32> to vector<16x128xf32>
    %9 = arith.addf %6, %8 : vector<16x128xf32>
    %cst = arith.constant 0.000000e+00 : f32
    %10 = vector.broadcast %cst : f32 to vector<16x128xf32>
    %11 = arith.maximumf %9, %10 : vector<16x128xf32>
    %c0_6 = arith.constant 0 : index
    %c0_7 = arith.constant 0 : index
    %c0_8 = arith.constant 0 : index
    %12 = vector.load %arg3[%c0_6, %c0_7, %c0_8] : memref<1x8x128xbf16, #tpu.memory_space<vmem>>, vector<1x8x128xbf16>
    %13 = vector.shape_cast %12 : vector<1x8x128xbf16> to vector<8x128xbf16>
    %14 = arith.extf %13 : vector<8x128xbf16> to vector<8x128xf32>
    %c0_9 = arith.constant 0 : index
    %c0_10 = arith.constant 0 : index
    %15 = vector.load %arg5[%c0_9, %c0_10] : memref<1x128xf32, #tpu.memory_space<vmem>>, vector<1x128xf32>
    %16 = vector.broadcast %15 : vector<1x128xf32> to vector<8x128xf32>
    %17 = arith.mulf %14, %16 : vector<8x128xf32>
    %c0_11 = arith.constant 0 : index
    %c0_12 = arith.constant 0 : index
    %18 = vector.load %arg6[%c0_11, %c0_12] : memref<1x128xf32, #tpu.memory_space<vmem>>, vector<1x128xf32>
    %19 = vector.broadcast %18 : vector<1x128xf32> to vector<8x128xf32>
    %20 = arith.addf %17, %19 : vector<8x128xf32>
    %cst_13 = arith.constant 0.000000e+00 : f32
    %21 = vector.broadcast %cst_13 : f32 to vector<8x128xf32>
    %22 = arith.maximumf %20, %21 : vector<8x128xf32>
    %c0_14 = arith.constant 0 : index
    %c0_15 = arith.constant 0 : index
    %c0_16 = arith.constant 0 : index
    %23 = vector.load %arg4[%c0_14, %c0_15, %c0_16] : memref<1x8x128xbf16, #tpu.memory_space<vmem>>, vector<1x8x128xbf16>
    %24 = vector.shape_cast %23 : vector<1x8x128xbf16> to vector<8x128xbf16>
    %25 = arith.extf %24 : vector<8x128xbf16> to vector<8x128xf32>
    %c0_17 = arith.constant 0 : index
    %c0_18 = arith.constant 0 : index
    %26 = vector.load %arg5[%c0_17, %c0_18] : memref<1x128xf32, #tpu.memory_space<vmem>>, vector<1x128xf32>
    %27 = vector.broadcast %26 : vector<1x128xf32> to vector<8x128xf32>
    %28 = arith.mulf %25, %27 : vector<8x128xf32>
    %c0_19 = arith.constant 0 : index
    %c0_20 = arith.constant 0 : index
    %29 = vector.load %arg6[%c0_19, %c0_20] : memref<1x128xf32, #tpu.memory_space<vmem>>, vector<1x128xf32>
    %30 = vector.broadcast %29 : vector<1x128xf32> to vector<8x128xf32>
    %31 = arith.addf %28, %30 : vector<8x128xf32>
    %cst_21 = arith.constant 0.000000e+00 : f32
    %32 = vector.broadcast %cst_21 : f32 to vector<8x128xf32>
    %33 = arith.maximumf %31, %32 : vector<8x128xf32>
    %34 = tpu.concatenate %22, %11, %33 in 0 : vector<8x128xf32>, vector<16x128xf32>, vector<8x128xf32> -> vector<32x128xf32>
    %35 = tpu.iota {dimensions = array<i32: 0>} : vector<16x1xi32>
    %36 = vector.broadcast %0 : i32 to vector<16x1xi32>
    %37 = arith.addi %36, %35 : vector<16x1xi32>
    %c25_i32 = arith.constant 25 : i32
    %38 = tpu.dynamic_rotate %34 by %c25_i32 dim 0 : vector<32x128xf32>, i32 -> vector<32x128xf32>
    %39 = vector.extract_strided_slice %38 {offsets = [0, 0], sizes = [16, 128], strides = [1, 1]} : vector<32x128xf32> to vector<16x128xf32>
    %c-1_i32 = arith.constant -1 : i32
    %40 = vector.broadcast %c-1_i32 : i32 to vector<16x1xi32>
    %41 = arith.addi %37, %40 : vector<16x1xi32>
    %c0_i32 = arith.constant 0 : i32
    %42 = vector.broadcast %c0_i32 : i32 to vector<16x1xi32>
    %43 = arith.cmpi sge, %41, %42 : vector<16x1xi32>
    %c-1_i32_22 = arith.constant -1 : i32
    %44 = vector.broadcast %c-1_i32_22 : i32 to vector<16x1xi32>
    %45 = arith.addi %37, %44 : vector<16x1xi32>
    %c16_i32_23 = arith.constant 16 : i32
    %46 = vector.broadcast %c16_i32_23 : i32 to vector<16x1xi32>
    %47 = arith.cmpi slt, %45, %46 : vector<16x1xi32>
    %48 = arith.andi %43, %47 : vector<16x1xi1>
    %cst_24 = arith.constant 0.000000e+00 : f32
    %49 = vector.shape_cast %48 : vector<16x1xi1> to vector<16x1xi1>
    %50 = vector.broadcast %49 : vector<16x1xi1> to vector<16x128xi1>
    %51 = vector.broadcast %cst_24 : f32 to vector<16x128xf32>
    %52 = arith.select %50, %39, %51 : vector<16x128xi1>, vector<16x128xf32>
    %c0_i32_25 = arith.constant 0 : i32
    %53 = vector.broadcast %c0_i32_25 : i32 to vector<16x1xi32>
    %54 = arith.addi %37, %53 : vector<16x1xi32>
    %c0_i32_26 = arith.constant 0 : i32
    %55 = vector.broadcast %c0_i32_26 : i32 to vector<16x1xi32>
    %56 = arith.cmpi sge, %54, %55 : vector<16x1xi32>
    %c0_i32_27 = arith.constant 0 : i32
    %57 = vector.broadcast %c0_i32_27 : i32 to vector<16x1xi32>
    %58 = arith.addi %37, %57 : vector<16x1xi32>
    %c16_i32_28 = arith.constant 16 : i32
    %59 = vector.broadcast %c16_i32_28 : i32 to vector<16x1xi32>
    %60 = arith.cmpi slt, %58, %59 : vector<16x1xi32>
    %61 = arith.andi %56, %60 : vector<16x1xi1>
    %cst_29 = arith.constant 0.000000e+00 : f32
    %62 = vector.shape_cast %61 : vector<16x1xi1> to vector<16x1xi1>
    %63 = vector.broadcast %62 : vector<16x1xi1> to vector<16x128xi1>
    %64 = vector.broadcast %cst_29 : f32 to vector<16x128xf32>
    %65 = arith.select %63, %11, %64 : vector<16x128xi1>, vector<16x128xf32>
    %c23_i32 = arith.constant 23 : i32
    %66 = tpu.dynamic_rotate %34 by %c23_i32 dim 0 : vector<32x128xf32>, i32 -> vector<32x128xf32>
    %67 = vector.extract_strided_slice %66 {offsets = [0, 0], sizes = [16, 128], strides = [1, 1]} : vector<32x128xf32> to vector<16x128xf32>
    %c1_i32 = arith.constant 1 : i32
    %68 = vector.broadcast %c1_i32 : i32 to vector<16x1xi32>
    %69 = arith.addi %37, %68 : vector<16x1xi32>
    %c0_i32_30 = arith.constant 0 : i32
    %70 = vector.broadcast %c0_i32_30 : i32 to vector<16x1xi32>
    %71 = arith.cmpi sge, %69, %70 : vector<16x1xi32>
    %c1_i32_31 = arith.constant 1 : i32
    %72 = vector.broadcast %c1_i32_31 : i32 to vector<16x1xi32>
    %73 = arith.addi %37, %72 : vector<16x1xi32>
    %c16_i32_32 = arith.constant 16 : i32
    %74 = vector.broadcast %c16_i32_32 : i32 to vector<16x1xi32>
    %75 = arith.cmpi slt, %73, %74 : vector<16x1xi32>
    %76 = arith.andi %71, %75 : vector<16x1xi1>
    %cst_33 = arith.constant 0.000000e+00 : f32
    %77 = vector.shape_cast %76 : vector<16x1xi1> to vector<16x1xi1>
    %78 = vector.broadcast %77 : vector<16x1xi1> to vector<16x128xi1>
    %79 = vector.broadcast %cst_33 : f32 to vector<16x128xf32>
    %80 = arith.select %78, %67, %79 : vector<16x128xi1>, vector<16x128xf32>
    %81 = tpu.concatenate %52, %65, %80 in 1 : vector<16x128xf32>, vector<16x128xf32>, vector<16x128xf32> -> vector<16x384xf32>
    %82 = arith.truncf %81 : vector<16x384xf32> to vector<16x384xbf16>
    %c0_34 = arith.constant 0 : index
    %c0_35 = arith.constant 0 : index
    %83 = vector.load %arg7[%c0_34, %c0_35] : memref<384x128xbf16, #tpu.memory_space<vmem>>, vector<384x128xbf16>
    %cst_36 = arith.constant dense<0.000000e+00> : vector<16x128xf32>
    %84 = tpu.matmul %82, %83, %cst_36 {dimension_numbers = #tpu.dot_dimension_numbers<[1], [0], [0], [1], [0, 0, 1, 1], [], []>} : vector<16x384xbf16>, vector<384x128xbf16>, vector<16x128xf32> -> vector<16x128xf32>
    %cst_37 = arith.constant dense<0.000000e+00> : vector<128xf32>
    %85 = vector.multi_reduction <add>, %84, %cst_37 [0] : vector<16x128xf32> to vector<128xf32>
    %86 = vector.shape_cast %85 : vector<128xf32> to vector<1x128xf32>
    %87 = vector.shape_cast %86 : vector<1x128xf32> to vector<1x1x128xf32>
    %c0_38 = arith.constant 0 : index
    %c0_39 = arith.constant 0 : index
    %c0_40 = arith.constant 0 : index
    %88 = vector.load %arg9[%c0_38, %c0_39, %c0_40] : memref<1x2x128xf32, #tpu.memory_space<vmem>>, vector<1x1x128xf32>
    tpu.vector_store %arg9[%c0_38, %c0_39, %c0_40], %87 {strides = array<i32>} : memref<1x2x128xf32, #tpu.memory_space<vmem>>, vector<1x1x128xf32>,
    %89 = arith.mulf %84, %84 : vector<16x128xf32>
    %cst_41 = arith.constant dense<0.000000e+00> : vector<128xf32>
    %90 = vector.multi_reduction <add>, %89, %cst_41 [0] : vector<16x128xf32> to vector<128xf32>
    %91 = vector.shape_cast %90 : vector<128xf32> to vector<1x128xf32>
    %92 = vector.shape_cast %91 : vector<1x128xf32> to vector<1x1x128xf32>
    %c0_42 = arith.constant 0 : index
    %c1 = arith.constant 1 : index
    %c0_43 = arith.constant 0 : index
    %93 = vector.load %arg9[%c0_42, %c1, %c0_43] : memref<1x2x128xf32, #tpu.memory_space<vmem>>, vector<1x1x128xf32>
    tpu.vector_store %arg9[%c0_42, %c1, %c0_43], %92 {strides = array<i32>} : memref<1x2x128xf32, #tpu.memory_space<vmem>>, vector<1x1x128xf32>,
    %94 = arith.truncf %84 : vector<16x128xf32> to vector<16x128xbf16>
    %c0_44 = arith.constant 0 : index
    %c0_45 = arith.constant 0 : index
    %c0_46 = arith.constant 0 : index
    %95 = vector.load %arg8[%c0_44, %c0_45, %c0_46] : memref<1x16x128xbf16, #tpu.memory_space<vmem>>, vector<1x16x128xbf16>
    %96 = vector.shape_cast %95 : vector<1x16x128xbf16> to vector<16x128xbf16>
    %97 = vector.shape_cast %94 : vector<16x128xbf16> to vector<1x16x128xbf16>
    tpu.vector_store %arg8[%c0_44, %c0_45, %c0_46], %97 {strides = array<i32>} : memref<1x16x128xbf16, #tpu.memory_space<vmem>>, vector<1x16x128xbf16>,
    return
  }
  func.func @transform_0(%arg0: i32, %arg1: i32) -> (i32, i32, i32) {
    %c0_i32 = arith.constant 0 : i32
    %c0_i32_0 = arith.constant 0 : i32
    return %arg0, %arg1, %c0_i32 : i32, i32, i32
  }
  func.func @transform_1(%arg0: i32, %arg1: i32) -> (i32, i32, i32) {
    %c2_i32 = arith.constant 2 : i32
    %0 = arith.muli %arg1, %c2_i32 : i32
    %c1_i32 = arith.constant 1 : i32
    %1 = arith.subi %0, %c1_i32 : i32
    %c0_i32 = arith.constant 0 : i32
    %2 = arith.maxsi %1, %c0_i32 : i32
    %c0_i32_0 = arith.constant 0 : i32
    %c0_i32_1 = arith.constant 0 : i32
    return %arg0, %2, %c0_i32_0 : i32, i32, i32
  }
  func.func @transform_2(%arg0: i32, %arg1: i32) -> (i32, i32, i32) {
    %c1_i32 = arith.constant 1 : i32
    %0 = arith.addi %arg1, %c1_i32 : i32
    %c2_i32 = arith.constant 2 : i32
    %1 = arith.muli %0, %c2_i32 : i32
    %c1_i32_0 = arith.constant 1 : i32
    %2 = arith.minsi %1, %c1_i32_0 : i32
    %c0_i32 = arith.constant 0 : i32
    %c0_i32_1 = arith.constant 0 : i32
    return %arg0, %2, %c0_i32 : i32, i32, i32
  }
  func.func @transform_3(%arg0: i32, %arg1: i32) -> (i32, i32) {
    %c0_i32 = arith.constant 0 : i32
    %c0_i32_0 = arith.constant 0 : i32
    %c0_i32_1 = arith.constant 0 : i32
    return %c0_i32, %c0_i32_0 : i32, i32
  }
  func.func @transform_4(%arg0: i32, %arg1: i32) -> (i32, i32) {
    %c0_i32 = arith.constant 0 : i32
    %c0_i32_0 = arith.constant 0 : i32
    %c0_i32_1 = arith.constant 0 : i32
    return %c0_i32, %c0_i32_0 : i32, i32
  }
  func.func @transform_5(%arg0: i32, %arg1: i32) -> (i32, i32) {
    %c0_i32 = arith.constant 0 : i32
    %c0_i32_0 = arith.constant 0 : i32
    %c0_i32_1 = arith.constant 0 : i32
    return %c0_i32, %c0_i32_0 : i32, i32
  }
  func.func @transform_6(%arg0: i32, %arg1: i32) -> (i32, i32, i32) {
    %c0_i32 = arith.constant 0 : i32
    %c0_i32_0 = arith.constant 0 : i32
    return %arg0, %arg1, %c0_i32 : i32, i32, i32
  }
  func.func @transform_7(%arg0: i32, %arg1: i32) -> (i32, i32, i32) {
    %c1_i32 = arith.constant 1 : i32
    %0 = arith.muli %arg0, %c1_i32 : i32
    %1 = arith.addi %0, %arg1 : i32
    %c0_i32 = arith.constant 0 : i32
    %c0_i32_0 = arith.constant 0 : i32
    %c0_i32_1 = arith.constant 0 : i32
    return %1, %c0_i32, %c0_i32_0 : i32, i32, i32
  }
}

</mosaic_0001>

<llo_original>
// kernel: bottleneck1d.6
$region0: #{bottleneck1d.6}
  #allocation0 [shape = 'u32[]', space=smem, size = 0x4, offset = 0x4, fixed_abs, tag = 'smem constant byte address 0x4 - core index']
  #allocation1 [shape = 'u32[72,128]{1,0:T(1,128)}', space=vmem, size = 0x9000, scoped, tag = 'internal scratch']
  %s0 = inlined_call_operand.vmem [shape: bf16[32,128], index: 0, kind: input, shape index: {}]
  %s1 = inlined_call_operand.vmem [shape: f32[1,128], index: 1, kind: input, shape index: {}]
  %s2 = inlined_call_operand.vmem [shape: f32[1,128], index: 2, kind: input, shape index: {}]
  %s3 = inlined_call_operand.vmem [shape: bf16[128,128], index: 3, kind: input, shape index: {}]
  %s4 = inlined_call_operand.vmem [shape: bf16[32,128], index: 4, kind: output, shape index: {0}]
  %s5 = inlined_call_operand.vmem [shape: f32[2,2,128], index: 5, kind: output, shape index: {1}]
  %6 = xla_tuple %s4, %s5
  %s7 = sld [smem:[#allocation0]]
  $region57: #{bottleneck1d.6} parent=0
    _
  %s9 = ssub.s32 1, %s7
  %s10 = scalar_select 0, %s9, %s7
  loop: start=0, step=1, limit=4
  $region2: #{bottleneck1d.6} parent=0 // loop_pre_header
    _
  $region3: #{bottleneck1d.6} parent=0 // loop_header
    %s12 = sphi 0, %s16
    %p13 = scmp.ge.s32.totalorder %s12, 4
    %s22 = sphi 0, %s24
    %s25 = sphi 0, %s22
    %s26 = sphi 0, %s25
    %s42 = sphi 0, %s26
    %s46 = sphi 0, %s46
    %s48 = sphi 0, %s46
    %s49 = sphi 0, %s48
    %s63 = sphi 0, %s49
    %s67 = sphi 0, %s67
    %s69 = sphi 0, %s67
    %s70 = sphi 0, %s69
    %s84 = sphi 0, %s70
    %s88 = sphi 0, %s88
    %s90 = sphi 0, %s88
    %s91 = sphi 0, %s90
    %s105 = sphi 0, %s91
    %s111 = sphi 0, %s113
    %s114 = sphi 0, %s111
    %s115 = sphi 0, %s114
    %s131 = sphi 0, %s115
    %s137 = sphi 0, %s139
    %s140 = sphi 0, %s137
    %s141 = sphi 0, %s140
    %s157 = sphi 0, %s141
  $region4: #{bottleneck1d.6} parent=0 // loop_header_branch
    %15 = sbr.rel (%p13) target = $region8
  $region5: #{bottleneck1d.6} parent=0 // loop_body
    %s17 = ssub.s32 %s12, 1
    %s18 = ssub.s32 %s12, 2
    %s19 = sadd.s32 %s12, 1
    %s20 = ssub.s32 %s12, %s19
    %p21 = scmp.eq.s32.totalorder %s20, 0
    %s23 = sadd.s32 %s22, 1
    %s24 = scalar_select %p21, %s22, %s23
    %p27 = pneg %p21
    %p28 = scmp.eq.s32.totalorder %s12, 1
    %p29 = por %p27, %p28
    %p30 = scmp.ne.s32.totalorder %s22, %s25
    %p31 = scmp.eq.s32.totalorder %s12, 0
    %p32 = por %p30, %p31
    %p33 = scmp.ne.s32.totalorder %s22, %s25
    %p34 = scmp.eq.s32.totalorder %s17, 1
    %p35 = por %p33, %p34
    %p36 = scmp.ne.s32.totalorder %s25, %s26
    %p37 = scmp.eq.s32.totalorder %s17, 0
    %p38 = por %p36, %p37
    %p39 = scmp.ne.s32.totalorder %s25, %s26
    %p40 = scmp.eq.s32.totalorder %s18, 1
    %p41 = por %p39, %p40
    %p43 = scmp.ne.s32.totalorder %s26, %s42
    %p44 = scmp.eq.s32.totalorder %s18, 0
    %p45 = por %p43, %p44
    %s47 = sadd.s32 %s46, 1
    %p50 = scmp.eq.s32.totalorder %s12, 1
    %p51 = scmp.ne.s32.totalorder %s46, %s48
    %p52 = scmp.eq.s32.totalorder %s12, 0
    %p53 = por %p51, %p52
    %p54 = scmp.ne.s32.totalorder %s46, %s48
    %p55 = scmp.eq.s32.totalorder %s17, 1
    %p56 = por %p54, %p55
    %p57 = scmp.ne.s32.totalorder %s48, %s49
    %p58 = scmp.eq.s32.totalorder %s17, 0
    %p59 = por %p57, %p58
    %p60 = scmp.ne.s32.totalorder %s48, %s49
    %p61 = scmp.eq.s32.totalorder %s18, 1
    %p62 = por %p60, %p61
    %p64 = scmp.ne.s32.totalorder %s49, %s63
    %p65 = scmp.eq.s32.totalorder %s18, 0
    %p66 = por %p64, %p65
    %s68 = sadd.s32 %s67, 1
    %p71 = scmp.eq.s32.totalorder %s12, 1
    %p72 = scmp.ne.s32.totalorder %s67, %s69
    %p73 = scmp.eq.s32.totalorder %s12, 0
    %p74 = por %p72, %p73
    %p75 = scmp.ne.s32.totalorder %s67, %s69
    %p76 = scmp.eq.s32.totalorder %s17, 1
    %p77 = por %p75, %p76
    %p78 = scmp.ne.s32.totalorder %s69, %s70
    %p79 = scmp.eq.s32.totalorder %s17, 0
    %p80 = por %p78, %p79
    %p81 = scmp.ne.s32.totalorder %s69, %s70
    %p82 = scmp.eq.s32.totalorder %s18, 1
    %p83 = por %p81, %p82
    %p85 = scmp.ne.s32.totalorder %s70, %s84
    %p86 = scmp.eq.s32.totalorder %s18, 0
    %p87 = por %p85, %p86
    %s89 = sadd.s32 %s88, 1
    %p92 = scmp.eq.s32.totalorder %s12, 1
    %p93 = scmp.ne.s32.totalorder %s88, %s90
    %p94 = scmp.eq.s32.totalorder %s12, 0
    %p95 = por %p93, %p94
    %p96 = scmp.ne.s32.totalorder %s88, %s90
    %p97 = scmp.eq.s32.totalorder %s17, 1
    %p98 = por %p96, %p97
    %p99 = scmp.ne.s32.totalorder %s90, %s91
    %p100 = scmp.eq.s32.totalorder %s17, 0
    %p101 = por %p99, %p100
    %p102 = scmp.ne.s32.totalorder %s90, %s91
    %p103 = scmp.eq.s32.totalorder %s18, 1
    %p104 = por %p102, %p103
    %p106 = scmp.ne.s32.totalorder %s91, %s105
    %p107 = scmp.eq.s32.totalorder %s18, 0
    %p108 = por %p106, %p107
    %s109 = ssub.s32 %s12, %s19
    %p110 = scmp.eq.s32.totalorder %s109, 0
    %s112 = sadd.s32 %s111, 1
    %s113 = scalar_select %p110, %s111, %s112
    %p116 = pneg %p110
    %p117 = scmp.eq.s32.totalorder %s12, 1
    %p118 = por %p116, %p117
    %p119 = scmp.ne.s32.totalorder %s111, %s114
    %p120 = scmp.eq.s32.totalorder %s12, 0
    %p121 = por %p119, %p120
    %p122 = scmp.ne.s32.totalorder %s111, %s114
    %p123 = scmp.eq.s32.totalorder %s17, 1
    %p124 = por %p122, %p123
    %p125 = scmp.ne.s32.totalorder %s114, %s115
    %p126 = scmp.eq.s32.totalorder %s17, 0
    %p127 = por %p125, %p126
    %p128 = scmp.ne.s32.totalorder %s114, %s115
    %p129 = scmp.eq.s32.totalorder %s18, 1
    %p130 = por %p128, %p129
    %p132 = scmp.ne.s32.totalorder %s115, %s131
    %p133 = scmp.eq.s32.totalorder %s18, 0
    %p134 = por %p132, %p133
    %s135 = ssub.s32 %s12, %s19
    %p136 = scmp.eq.s32.totalorder %s135, 0
    %s138 = sadd.s32 %s137, 1
    %s139 = scalar_select %p136, %s137, %s138
    %p142 = pneg %p136
    %p143 = scmp.eq.s32.totalorder %s12, 1
    %p144 = por %p142, %p143
    %p145 = scmp.ne.s32.totalorder %s137, %s140
    %p146 = scmp.eq.s32.totalorder %s12, 0
    %p147 = por %p145, %p146
    %p148 = scmp.ne.s32.totalorder %s137, %s140
    %p149 = scmp.eq.s32.totalorder %s17, 1
    %p150 = por %p148, %p149
    %p151 = scmp.ne.s32.totalorder %s140, %s141
    %p152 = scmp.eq.s32.totalorder %s17, 0
    %p153 = por %p151, %p152
    %p154 = scmp.ne.s32.totalorder %s140, %s141
    %p155 = scmp.eq.s32.totalorder %s18, 1
    %p156 = por %p154, %p155
    %p158 = scmp.ne.s32.totalorder %s141, %s157
    %p159 = scmp.eq.s32.totalorder %s18, 0
    %p160 = por %p158, %p159
    %p161 = scmp.le.s32.totalorder 1, %s12
    %p162 = scmp.lt.s32.totalorder %s12, 3
    %p163 = pnand %p161, %p162
    %p164 = pneg %p163
    // Predicated region
    $region9: #{bottleneck1d.6} parent=5 // pred_check
      _
    $region10: #{bottleneck1d.6} parent=5 // pred_check_branch
      %166 = sbr.rel (%p163) target = $region12
    $region11: #{bottleneck1d.6} parent=5 // pred_region
      %s167 = ssub.s32 %s12, 1
      // Predicated region
      $region13: #{bottleneck1d.6} parent=11 // pred_check
        %p168 = pneg %p59
      $region14: #{bottleneck1d.6} parent=11 // pred_check_branch
        %170 = sbr.rel (%p168) target = $region16
      $region15: #{bottleneck1d.6} parent=11 // pred_region
        _
      $region16: #{bottleneck1d.6} parent=11 // pred_fallthru
        _
      // Predicated region
      $region17: #{bottleneck1d.6} parent=11 // pred_check
        %p171 = pneg %p80
      $region18: #{bottleneck1d.6} parent=11 // pred_check_branch
        %173 = sbr.rel (%p171) target = $region20
      $region19: #{bottleneck1d.6} parent=11 // pred_region
        _
      $region20: #{bottleneck1d.6} parent=11 // pred_fallthru
        _
      // Predicated region
      $region21: #{bottleneck1d.6} parent=11 // pred_check
        %p174 = pneg %p101
      $region22: #{bottleneck1d.6} parent=11 // pred_check_branch
        %176 = sbr.rel (%p174) target = $region24
      $region23: #{bottleneck1d.6} parent=11 // pred_region
        _
      $region24: #{bottleneck1d.6} parent=11 // pred_fallthru
        _
    $region12: #{bottleneck1d.6} parent=5 // pred_fallthru
      _
    %p177 = scmp.lt.s32.totalorder %s12, 2
    // Predicated region
    $region25: #{bottleneck1d.6} parent=5 // pred_check
      %p178 = pneg %p177
    $region26: #{bottleneck1d.6} parent=5 // pred_check_branch
      %180 = sbr.rel (%p178) target = $region28
    $region27: #{bottleneck1d.6} parent=5 // pred_region
      // Predicated region
      $region29: #{bottleneck1d.6} parent=27 // pred_check
        %p181 = pneg %p32
      $region30: #{bottleneck1d.6} parent=27 // pred_check_branch
        %183 = sbr.rel (%p181) target = $region32
      $region31: #{bottleneck1d.6} parent=27 // pred_region
        %s184 = smul.u32 2, %s12
        %p185 = scmp.lt.s32.totalorder %s184, 3
        %s186 = scalar_select %p185, %s184, 3
        %s187 = smul.addr %s186, 4
        %s188 = scalar_lea.vmem %s0, %s187
        %s189 = smul.u32 2, %s12
      $region32: #{bottleneck1d.6} parent=27 // pred_fallthru
        _
    $region28: #{bottleneck1d.6} parent=5 // pred_fallthru
      _
    %p190 = scmp.le.s32.totalorder 1, %s12
    %p191 = scmp.lt.s32.totalorder %s12, 3
    %p192 = pnand %p190, %p191
    %p193 = pneg %p192
    // Predicated region
    $region33: #{bottleneck1d.6} parent=5 // pred_check
      _
    $region34: #{bottleneck1d.6} parent=5 // pred_check_branch
      %195 = sbr.rel (%p192) target = $region36
    $region35: #{bottleneck1d.6} parent=5 // pred_region
      %s196 = ssub.s32 %s12, 1
      %s197 = smul.u32 2, %s17
      %p198 = scmp.lt.s32.totalorder %s197, 3
      %s199 = scalar_select %p198, %s197, 3
      %s200 = smul.addr %s199, 4
      %s201 = scalar_lea.vmem %s0, %s200
      %p202 = pneg %p38
      %p203 = pneg %p35
      %p204 = pneg %p59
      %p205 = pneg %p56
      %p206 = pneg %p80
      %p207 = pneg %p77
      %p208 = pneg %p101
      %p209 = pneg %p98
      %p210 = pneg %p127
      %p211 = pneg %p124
      %s212 = smul.u32 2, %s17
      %p213 = scmp.lt.s32.totalorder %s212, 3
      %s214 = scalar_select %p213, %s212, 3
      %s215 = smul.addr %s214, 4
      %s216 = scalar_lea.vmem %s4, %s215
      %p217 = pneg %p153
      %p218 = pneg %p150
      %p219 = scmp.lt.s32.totalorder %s17, 1
      %s220 = scalar_select %p219, %s17, 1
      %s221 = smul.addr %s220, 2
      %s222 = scalar_lea.vmem %s5, %s221
      %s223 = smul.u32 2, %s17
      %p224 = scmp.lt.s32.totalorder %s223, 3
      %s225 = scalar_select %p224, %s223, 3
      %s226 = smul.addr %s225, 4
      %s227 = scalar_lea.vmem %s0, %s226
      %s228 = smul.u32 2, %s17
      %s229 = smul.u32 2, %s17
      %p230 = scmp.lt.s32.totalorder %s229, 3
      %s231 = scalar_select %p230, %s229, 3
      %s232 = smul.addr %s231, 4
      %s233 = scalar_lea.vmem %s4, %s232
      %s234 = smul.u32 2, %s17
      %p235 = scmp.lt.s32.totalorder %s17, 1
      %s236 = scalar_select %p235, %s17, 1
      %s237 = smul.addr %s236, 2
      %s238 = scalar_lea.vmem %s5, %s237
      %v239 = vld [vmem:[%s227] sm:$0xf]
      %v240 = vld [vmem:[%s227 + $0x4] sm:$0xf]
      %v241 = vunpack.c.l.bf16 %v239
      %v242 = vunpack.c.l.bf16 %v240
      %v243 = vld [vmem:[%s1] sm:$0x1]
      %v245 = vperm.slane %v243, 0
      %v247 = vmul.f32 %v241, %v245
      %v248 = vmul.f32 %v242, %v245
      %v249 = vld [vmem:[%s2] sm:$0x1]
      %v251 = vperm.slane %v249, 0
      %v253 = vadd.f32 %v247, %v251
      %v254 = vadd.f32 %v248, %v251
      %v255 = vmax.f32 %v253, 0.0
      %v256 = vmax.f32 %v254, 0.0
      %v257 = vpack.c.bf16 %v256, %v255
      %v258 = vld [vmem:[%s3] sm:$0xf]
      %v259 = vld [vmem:[%s3 + $0x4] sm:$0xf]
      %v260 = vld [vmem:[%s3 + $0x8] sm:$0xf]
      %v261 = vld [vmem:[%s3 + $0xc] sm:$0xf]
      %v262 = vld [vmem:[%s3 + $0x10] sm:$0xf]
      %v263 = vld [vmem:[%s3 + $0x14] sm:$0xf]
      %v264 = vld [vmem:[%s3 + $0x18] sm:$0xf]
      %v265 = vld [vmem:[%s3 + $0x1c] sm:$0xf]
      %v266 = vld [vmem:[%s3 + $0x20] sm:$0xf]
      %v267 = vld [vmem:[%s3 + $0x24] sm:$0xf]
      %v268 = vld [vmem:[%s3 + $0x28] sm:$0xf]
      %v269 = vld [vmem:[%s3 + $0x2c] sm:$0xf]
      %v270 = vld [vmem:[%s3 + $0x30] sm:$0xf]
      %v271 = vld [vmem:[%s3 + $0x34] sm:$0xf]
      %v272 = vld [vmem:[%s3 + $0x38] sm:$0xf]
      %v273 = vld [vmem:[%s3 + $0x3c] sm:$0xf]
      %v290 = vunpack.c.l.b16 %v258
      %v291 = vunpack.c.l.b16 %v259
      %v292 = vunpack.c.l.b16 %v260
      %v293 = vunpack.c.l.b16 %v261
      %v294 = vunpack.c.l.b16 %v262
      %v295 = vunpack.c.l.b16 %v263
      %v296 = vunpack.c.l.b16 %v264
      %v297 = vunpack.c.l.b16 %v265
      %v298 = vunpack.c.l.b16 %v266
      %v299 = vunpack.c.l.b16 %v267
      %v300 = vunpack.c.l.b16 %v268
      %v301 = vunpack.c.l.b16 %v269
      %v302 = vunpack.c.l.b16 %v270
      %v303 = vunpack.c.l.b16 %v271
      %v304 = vunpack.c.l.b16 %v272
      %v305 = vunpack.c.l.b16 %v273
      %v306 = vpack.c.b16 %v291, %v290
      %v307 = vpack.c.b16 %v293, %v292
      %v308 = vpack.c.b16 %v295, %v294
      %v309 = vpack.c.b16 %v297, %v296
      %v310 = vpack.c.b16 %v299, %v298
      %v311 = vpack.c.b16 %v301, %v300
      %v312 = vpack.c.b16 %v303, %v302
      %v313 = vpack.c.b16 %v305, %v304
      %322 = vmatpush.bf16.msra.mxu0 %v313
      %323 = vmatpush.bf16.msra.mxu0 %v312
      %324 = vmatpush.bf16.msra.mxu0 %v311
      %325 = vmatpush.bf16.msra.mxu0 %v310
      %326 = vmatpush.bf16.msra.mxu0 %v309
      %327 = vmatpush.bf16.msra.mxu0 %v308
      %328 = vmatpush.bf16.msra.mxu0 %v307
      %329 = vmatpush.bf16.msra.mxu0 %v306
      %330 = vmatmul.bf16.gmra.mxu0 %v257
      %v331 = vpop.f32.mrf.mxu0
      %v332 = vadd.f32 0.0, %v331
      %v333 = vpop.f32.mrf.mxu0
      %v334 = vadd.f32 0.0, %v333
      %335 = vdwg.mxu0
      %v336 = vadd.f32 %v332, %v334
      %v337 = vrot.slane %v336, 4
      %v338 = vadd.f32 %v336, %v337
      %v339 = vrot.slane %v338, 2
      %v340 = vadd.f32 %v338, %v339
      %v341 = vrot.slane %v340, 1
      %v342 = vadd.f32 %v340, %v341
      %343 = vst [vmem:[%s238] sm:$0x1] %v342
      %v344 = vmul.f32 %v332, %v332
      %v345 = vmul.f32 %v334, %v334
      %v346 = vadd.f32 %v344, %v345
      %v347 = vrot.slane %v346, 4
      %v348 = vadd.f32 %v346, %v347
      %v349 = vrot.slane %v348, 2
      %v350 = vadd.f32 %v348, %v349
      %v351 = vrot.slane %v350, 1
      %v352 = vadd.f32 %v350, %v351
      %353 = vst [vmem:[%s238 + $0x1] sm:$0x1] %v352
      %v354 = vpack.c.bf16 %v332, %v332
      %v355 = vpack.c.bf16 %v334, %v334
      %356 = vst [vmem:[%s233] sm:$0xf] %v354
      %357 = vst [vmem:[%s233 + $0x4] sm:$0xf] %v355
      %s358 = smul.u32 2, %s17
      %p359 = scmp.lt.s32.totalorder %s358, 3
      %s360 = scalar_select %p359, %s358, 3
      %s361 = smul.addr %s360, 4
      %s362 = scalar_lea.vmem %s4, %s361
      %p363 = scmp.lt.s32.totalorder %s17, 1
      %s364 = scalar_select %p363, %s17, 1
      %s365 = smul.addr %s364, 2
      %s366 = scalar_lea.vmem %s5, %s365
      // Predicated region
      $region37: #{bottleneck1d.6} parent=35 // pred_check
        %p367 = pneg %p124
      $region38: #{bottleneck1d.6} parent=35 // pred_check_branch
        %369 = sbr.rel (%p367) target = $region40
      $region39: #{bottleneck1d.6} parent=35 // pred_region
        %s370 = smul.u32 2, %s17
      $region40: #{bottleneck1d.6} parent=35 // pred_fallthru
        _
      // Predicated region
      $region41: #{bottleneck1d.6} parent=35 // pred_check
        %p371 = pneg %p150
      $region42: #{bottleneck1d.6} parent=35 // pred_check_branch
        %373 = sbr.rel (%p371) target = $region44
      $region43: #{bottleneck1d.6} parent=35 // pred_region
        _
      $region44: #{bottleneck1d.6} parent=35 // pred_fallthru
        _
    $region36: #{bottleneck1d.6} parent=5 // pred_fallthru
      _
    %p374 = scmp.le.s32.totalorder 2, %s12
    // Predicated region
    $region45: #{bottleneck1d.6} parent=5 // pred_check
      %p375 = pneg %p374
    $region46: #{bottleneck1d.6} parent=5 // pred_check_branch
      %377 = sbr.rel (%p375) target = $region48
    $region47: #{bottleneck1d.6} parent=5 // pred_region
      %s378 = ssub.s32 %s12, 2
      // Predicated region
      $region49: #{bottleneck1d.6} parent=47 // pred_check
        %p379 = pneg %p130
      $region50: #{bottleneck1d.6} parent=47 // pred_check_branch
        %381 = sbr.rel (%p379) target = $region52
      $region51: #{bottleneck1d.6} parent=47 // pred_region
        %s382 = smul.u32 2, %s18
        %p383 = scmp.lt.s32.totalorder %s382, 3
        %s384 = scalar_select %p383, %s382, 3
        %s385 = smul.addr %s384, 4
        %s386 = scalar_lea.vmem %s4, %s385
      $region52: #{bottleneck1d.6} parent=47 // pred_fallthru
        _
      // Predicated region
      $region53: #{bottleneck1d.6} parent=47 // pred_check
        %p387 = pneg %p156
      $region54: #{bottleneck1d.6} parent=47 // pred_check_branch
        %389 = sbr.rel (%p387) target = $region56
      $region55: #{bottleneck1d.6} parent=47 // pred_region
        %p390 = scmp.lt.s32.totalorder %s18, 1
        %s391 = scalar_select %p390, %s18, 1
        %s392 = smul.addr %s391, 2
        %s393 = scalar_lea.vmem %s5, %s392
      $region56: #{bottleneck1d.6} parent=47 // pred_fallthru
        _
    $region48: #{bottleneck1d.6} parent=5 // pred_fallthru
      _
  $region6: #{bottleneck1d.6} parent=0 // loop_footer
    %s16 = sadd.s32 1, %s12
  $region7: #{bottleneck1d.6} parent=0 // loop_footer_branch
    %11 = sbr.rel target = $region3
  $region8: #{bottleneck1d.6} parent=0 // loop_exit
    _

// kernel: bottleneck1d.4
$region0: #{bottleneck1d.4}
  #allocation0 [shape = 'u32[]', space=smem, size = 0x4, offset = 0x4, fixed_abs, tag = 'smem constant byte address 0x4 - core index']
  #allocation1 [shape = 'u32[72,128]{1,0:T(1,128)}', space=vmem, size = 0x9000, scoped, tag = 'internal scratch']
  %s0 = inlined_call_operand.vmem [shape: bf16[32,128], index: 0, kind: input, shape index: {}]
  %s1 = inlined_call_operand.hbm [shape: bf16[128,128], index: 1, kind: input, shape index: {}]
  %s2 = inlined_call_operand.vmem [shape: bf16[32,128], index: 2, kind: output, shape index: {0}]
  %s3 = inlined_call_operand.vmem [shape: f32[2,2,128], index: 3, kind: output, shape index: {1}]
  %4 = xla_tuple %s2, %s3
  %s5 = sld [smem:[#allocation0]]
  $region53: #{bottleneck1d.4} parent=0
    _
  %s7 = ssub.s32 1, %s5
  %s8 = scalar_select 0, %s7, %s5
  $region1: #{bottleneck1d.4} parent=0
    #allocation2 [shape = 'u8[32768]{0}', space=vmem, size = 0x8000, scoped, tag = 'input window, operand 1, single buffered']
    #allocation3 [shape = 's32[2]{0}', space=sflag, size = 0x8, scoped, tag = 'scoped memory for bottleneck1d.4']
    %9 = vsyncpa [#allocation3], 0
    loop: start=0, step=1, limit=4
    $region2: #{bottleneck1d.4} parent=1 // loop_pre_header
      _
    $region3: #{bottleneck1d.4} parent=1 // loop_header
      %s11 = sphi 0, %s15
      %p12 = scmp.ge.s32.totalorder %s11, 4
      %s21 = sphi 0, %s23
      %s24 = sphi 0, %s21
      %s25 = sphi 0, %s24
      %s41 = sphi 0, %s25
      %s45 = sphi 0, %s45
      %s47 = sphi 0, %s45
      %s48 = sphi 0, %s47
      %s62 = sphi 0, %s48
      %s68 = sphi 0, %s70
      %s71 = sphi 0, %s68
      %s72 = sphi 0, %s71
      %s88 = sphi 0, %s72
      %s94 = sphi 0, %s96
      %s97 = sphi 0, %s94
      %s98 = sphi 0, %s97
      %s114 = sphi 0, %s98
    $region4: #{bottleneck1d.4} parent=1 // loop_header_branch
      %14 = sbr.rel (%p12) target = $region8
    $region5: #{bottleneck1d.4} parent=1 // loop_body
      %s16 = ssub.s32 %s11, 1
      %s17 = ssub.s32 %s11, 2
      %s18 = sadd.s32 %s11, 1
      %s19 = ssub.s32 %s11, %s18
      %p20 = scmp.eq.s32.totalorder %s19, 0
      %s22 = sadd.s32 %s21, 1
      %s23 = scalar_select %p20, %s21, %s22
      %p26 = pneg %p20
      %p27 = scmp.eq.s32.totalorder %s11, 1
      %p28 = por %p26, %p27
      %p29 = scmp.ne.s32.totalorder %s21, %s24
      %p30 = scmp.eq.s32.totalorder %s11, 0
      %p31 = por %p29, %p30
      %p32 = scmp.ne.s32.totalorder %s21, %s24
      %p33 = scmp.eq.s32.totalorder %s16, 1
      %p34 = por %p32, %p33
      %p35 = scmp.ne.s32.totalorder %s24, %s25
      %p36 = scmp.eq.s32.totalorder %s16, 0
      %p37 = por %p35, %p36
      %p38 = scmp.ne.s32.totalorder %s24, %s25
      %p39 = scmp.eq.s32.totalorder %s17, 1
      %p40 = por %p38, %p39
      %p42 = scmp.ne.s32.totalorder %s25, %s41
      %p43 = scmp.eq.s32.totalorder %s17, 0
      %p44 = por %p42, %p43
      %s46 = sadd.s32 %s45, 1
      %p49 = scmp.eq.s32.totalorder %s11, 1
      %p50 = scmp.ne.s32.totalorder %s45, %s47
      %p51 = scmp.eq.s32.totalorder %s11, 0
      %p52 = por %p50, %p51
      %p53 = scmp.ne.s32.totalorder %s45, %s47
      %p54 = scmp.eq.s32.totalorder %s16, 1
      %p55 = por %p53, %p54
      %p56 = scmp.ne.s32.totalorder %s47, %s48
      %p57 = scmp.eq.s32.totalorder %s16, 0
      %p58 = por %p56, %p57
      %p59 = scmp.ne.s32.totalorder %s47, %s48
      %p60 = scmp.eq.s32.totalorder %s17, 1
      %p61 = por %p59, %p60
      %p63 = scmp.ne.s32.totalorder %s48, %s62
      %p64 = scmp.eq.s32.totalorder %s17, 0
      %p65 = por %p63, %p64
      %s66 = ssub.s32 %s11, %s18
      %p67 = scmp.eq.s32.totalorder %s66, 0
      %s69 = sadd.s32 %s68, 1
      %s70 = scalar_select %p67, %s68, %s69
      %p73 = pneg %p67
      %p74 = scmp.eq.s32.totalorder %s11, 1
      %p75 = por %p73, %p74
      %p76 = scmp.ne.s32.totalorder %s68, %s71
      %p77 = scmp.eq.s32.totalorder %s11, 0
      %p78 = por %p76, %p77
      %p79 = scmp.ne.s32.totalorder %s68, %s71
      %p80 = scmp.eq.s32.totalorder %s16, 1
      %p81 = por %p79, %p80
      %p82 = scmp.ne.s32.totalorder %s71, %s72
      %p83 = scmp.eq.s32.totalorder %s16, 0
      %p84 = por %p82, %p83
      %p85 = scmp.ne.s32.totalorder %s71, %s72
      %p86 = scmp.eq.s32.totalorder %s17, 1
      %p87 = por %p85, %p86
      %p89 = scmp.ne.s32.totalorder %s72, %s88
      %p90 = scmp.eq.s32.totalorder %s17, 0
      %p91 = por %p89, %p90
      %s92 = ssub.s32 %s11, %s18
      %p93 = scmp.eq.s32.totalorder %s92, 0
      %s95 = sadd.s32 %s94, 1
      %s96 = scalar_select %p93, %s94, %s95
      %p99 = pneg %p93
      %p100 = scmp.eq.s32.totalorder %s11, 1
      %p101 = por %p99, %p100
      %p102 = scmp.ne.s32.totalorder %s94, %s97
      %p103 = scmp.eq.s32.totalorder %s11, 0
      %p104 = por %p102, %p103
      %p105 = scmp.ne.s32.totalorder %s94, %s97
      %p106 = scmp.eq.s32.totalorder %s16, 1
      %p107 = por %p105, %p106
      %p108 = scmp.ne.s32.totalorder %s97, %s98
      %p109 = scmp.eq.s32.totalorder %s16, 0
      %p110 = por %p108, %p109
      %p111 = scmp.ne.s32.totalorder %s97, %s98
      %p112 = scmp.eq.s32.totalorder %s17, 1
      %p113 = por %p111, %p112
      %p115 = scmp.ne.s32.totalorder %s98, %s114
      %p116 = scmp.eq.s32.totalorder %s17, 0
      %p117 = por %p115, %p116
      %p118 = scmp.le.s32.totalorder 1, %s11
      %p119 = scmp.lt.s32.totalorder %s11, 3
      %p120 = pnand %p118, %p119
      %p121 = pneg %p120
      // Predicated region
      $region9: #{bottleneck1d.4} parent=5 // pred_check
        _
      $region10: #{bottleneck1d.4} parent=5 // pred_check_branch
        %123 = sbr.rel (%p120) target = $region12
      $region11: #{bottleneck1d.4} parent=5 // pred_region
        %s124 = ssub.s32 %s11, 1
        // Predicated region
        $region13: #{bottleneck1d.4} parent=11 // pred_check
          %p125 = pneg %p58
        $region14: #{bottleneck1d.4} parent=11 // pred_check_branch
          %127 = sbr.rel (%p125) target = $region16
        $region15: #{bottleneck1d.4} parent=11 // pred_region
          %129 = vsyncadd [#allocation3], 0
          %s130 = sshll.u32 %s1, 4
          %s131 = int_to_ptr.hbm [resolvable:$true] %s130
          %s132 = sshll.u32 [#allocation2], 4
          %s133 = int_to_ptr.vmem [resolvable:$true] %s132
          %138 = dma.hbm_to_vmem [thread:$0]  %s131, 1024, %s133, [#allocation3], 64, 64, 4
        $region16: #{bottleneck1d.4} parent=11 // pred_fallthru
          _
      $region12: #{bottleneck1d.4} parent=5 // pred_fallthru
        _
      %p139 = scmp.lt.s32.totalorder %s11, 2
      // Predicated region
      $region17: #{bottleneck1d.4} parent=5 // pred_check
        %p140 = pneg %p139
      $region18: #{bottleneck1d.4} parent=5 // pred_check_branch
        %142 = sbr.rel (%p140) target = $region20
      $region19: #{bottleneck1d.4} parent=5 // pred_region
        // Predicated region
        $region21: #{bottleneck1d.4} parent=19 // pred_check
          %p143 = pneg %p31
        $region22: #{bottleneck1d.4} parent=19 // pred_check_branch
          %145 = sbr.rel (%p143) target = $region24
        $region23: #{bottleneck1d.4} parent=19 // pred_region
          %s146 = smul.u32 2, %s11
          %p147 = scmp.lt.s32.totalorder %s146, 3
          %s148 = scalar_select %p147, %s146, 3
          %s149 = smul.addr %s148, 4
          %s150 = scalar_lea.vmem %s0, %s149
          %s151 = smul.u32 2, %s11
        $region24: #{bottleneck1d.4} parent=19 // pred_fallthru
          _
      $region20: #{bottleneck1d.4} parent=5 // pred_fallthru
        _
      %p152 = scmp.le.s32.totalorder 1, %s11
      %p153 = scmp.lt.s32.totalorder %s11, 3
      %p154 = pnand %p152, %p153
      %p155 = pneg %p154
      // Predicated region
      $region25: #{bottleneck1d.4} parent=5 // pred_check
        _
      $region26: #{bottleneck1d.4} parent=5 // pred_check_branch
        %157 = sbr.rel (%p154) target = $region28
      $region27: #{bottleneck1d.4} parent=5 // pred_region
        %s158 = ssub.s32 %s11, 1
        // Predicated region
        $region29: #{bottleneck1d.4} parent=27 // pred_check
          %p159 = pneg %p58
        $region30: #{bottleneck1d.4} parent=27 // pred_check_branch
          %161 = sbr.rel (%p159) target = $region32
        $region31: #{bottleneck1d.4} parent=27 // pred_region
          %163 = dma.done [#allocation3], 1024
        $region32: #{bottleneck1d.4} parent=27 // pred_fallthru
          _
        %s164 = smul.u32 2, %s16
        %p165 = scmp.lt.s32.totalorder %s164, 3
        %s166 = scalar_select %p165, %s164, 3
        %s167 = smul.addr %s166, 4
        %s168 = scalar_lea.vmem %s0, %s167
        %p169 = pneg %p37
        %p170 = pneg %p34
        %p171 = pneg %p58
        %p172 = pneg %p55
        %p173 = pneg %p84
        %p174 = pneg %p81
        %s175 = smul.u32 2, %s16
        %p176 = scmp.lt.s32.totalorder %s175, 3
        %s177 = scalar_select %p176, %s175, 3
        %s178 = smul.addr %s177, 4
        %s179 = scalar_lea.vmem %s2, %s178
        %p180 = pneg %p110
        %p181 = pneg %p107
        %p182 = scmp.lt.s32.totalorder %s16, 1
        %s183 = scalar_select %p182, %s16, 1
        %s184 = smul.addr %s183, 2
        %s185 = scalar_lea.vmem %s3, %s184
        %s186 = smul.u32 2, %s16
        %p187 = scmp.lt.s32.totalorder %s186, 3
        %s188 = scalar_select %p187, %s186, 3
        %s189 = smul.addr %s188, 4
        %s190 = scalar_lea.vmem %s0, %s189
        %s191 = smul.u32 2, %s16
        %s192 = smul.u32 2, %s16
        %p193 = scmp.lt.s32.totalorder %s192, 3
        %s194 = scalar_select %p193, %s192, 3
        %s195 = smul.addr %s194, 4
        %s196 = scalar_lea.vmem %s2, %s195
        %s197 = smul.u32 2, %s16
        %p198 = scmp.lt.s32.totalorder %s16, 1
        %s199 = scalar_select %p198, %s16, 1
        %s200 = smul.addr %s199, 2
        %s201 = scalar_lea.vmem %s3, %s200
        %v202 = vld [vmem:[%s190] sm:$0xf]
        %v203 = vld [vmem:[%s190 + $0x4] sm:$0xf]
        %v204 = vld [vmem:[#allocation2] sm:$0xf]
        %v205 = vld [vmem:[#allocation2 + $0x4] sm:$0xf]
        %v206 = vld [vmem:[#allocation2 + $0x8] sm:$0xf]
        %v207 = vld [vmem:[#allocation2 + $0xc] sm:$0xf]
        %v208 = vld [vmem:[#allocation2 + $0x10] sm:$0xf]
        %v209 = vld [vmem:[#allocation2 + $0x14] sm:$0xf]
        %v210 = vld [vmem:[#allocation2 + $0x18] sm:$0xf]
        %v211 = vld [vmem:[#allocation2 + $0x1c] sm:$0xf]
        %v212 = vld [vmem:[#allocation2 + $0x20] sm:$0xf]
        %v213 = vld [vmem:[#allocation2 + $0x24] sm:$0xf]
        %v214 = vld [vmem:[#allocation2 + $0x28] sm:$0xf]
        %v215 = vld [vmem:[#allocation2 + $0x2c] sm:$0xf]
        %v216 = vld [vmem:[#allocation2 + $0x30] sm:$0xf]
        %v217 = vld [vmem:[#allocation2 + $0x34] sm:$0xf]
        %v218 = vld [vmem:[#allocation2 + $0x38] sm:$0xf]
        %v219 = vld [vmem:[#allocation2 + $0x3c] sm:$0xf]
        %v222 = vunpack.c.l.b16 %v202
        %v223 = vunpack.c.l.b16 %v203
        %v224 = vpack.c.b16 %v223, %v222
        %v242 = vunpack.c.l.b16 %v204
        %v243 = vunpack.c.l.b16 %v205
        %v244 = vunpack.c.l.b16 %v206
        %v245 = vunpack.c.l.b16 %v207
        %v246 = vunpack.c.l.b16 %v208
        %v247 = vunpack.c.l.b16 %v209
        %v248 = vunpack.c.l.b16 %v210
        %v249 = vunpack.c.l.b16 %v211
        %v250 = vunpack.c.l.b16 %v212
        %v251 = vunpack.c.l.b16 %v213
        %v252 = vunpack.c.l.b16 %v214
        %v253 = vunpack.c.l.b16 %v215
        %v254 = vunpack.c.l.b16 %v216
        %v255 = vunpack.c.l.b16 %v217
        %v256 = vunpack.c.l.b16 %v218
        %v257 = vunpack.c.l.b16 %v219
        %v258 = vpack.c.b16 %v243, %v242
        %v259 = vpack.c.b16 %v245, %v244
        %v260 = vpack.c.b16 %v247, %v246
        %v261 = vpack.c.b16 %v249, %v248
        %v262 = vpack.c.b16 %v251, %v250
        %v263 = vpack.c.b16 %v253, %v252
        %v264 = vpack.c.b16 %v255, %v254
        %v265 = vpack.c.b16 %v257, %v256
        %274 = vmatpush.bf16.msra.mxu0 %v265
        %275 = vmatpush.bf16.msra.mxu0 %v264
        %276 = vmatpush.bf16.msra.mxu0 %v263
        %277 = vmatpush.bf16.msra.mxu0 %v262
        %278 = vmatpush.bf16.msra.mxu0 %v261
        %279 = vmatpush.bf16.msra.mxu0 %v260
        %280 = vmatpush.bf16.msra.mxu0 %v259
        %281 = vmatpush.bf16.msra.mxu0 %v258
        %282 = vmatmul.bf16.gmra.mxu0 %v224
        %v283 = vpop.f32.mrf.mxu0
        %v284 = vadd.f32 0.0, %v283
        %v285 = vpop.f32.mrf.mxu0
        %v286 = vadd.f32 0.0, %v285
        %287 = vdwg.mxu0
        %v288 = vadd.f32 %v284, %v286
        %v289 = vrot.slane %v288, 4
        %v290 = vadd.f32 %v288, %v289
        %v291 = vrot.slane %v290, 2
        %v292 = vadd.f32 %v290, %v291
        %v293 = vrot.slane %v292, 1
        %v294 = vadd.f32 %v292, %v293
        %295 = vst [vmem:[%s201] sm:$0x1] %v294
        %v296 = vmul.f32 %v284, %v284
        %v297 = vmul.f32 %v286, %v286
        %v298 = vadd.f32 %v296, %v297
        %v299 = vrot.slane %v298, 4
        %v300 = vadd.f32 %v298, %v299
        %v301 = vrot.slane %v300, 2
        %v302 = vadd.f32 %v300, %v301
        %v303 = vrot.slane %v302, 1
        %v304 = vadd.f32 %v302, %v303
        %305 = vst [vmem:[%s201 + $0x1] sm:$0x1] %v304
        %v306 = vpack.c.bf16 %v284, %v284
        %v307 = vpack.c.bf16 %v286, %v286
        %308 = vst [vmem:[%s196] sm:$0xf] %v306
        %309 = vst [vmem:[%s196 + $0x4] sm:$0xf] %v307
        %s310 = smul.u32 2, %s16
        %p311 = scmp.lt.s32.totalorder %s310, 3
        %s312 = scalar_select %p311, %s310, 3
        %s313 = smul.addr %s312, 4
        %s314 = scalar_lea.vmem %s2, %s313
        %p315 = scmp.lt.s32.totalorder %s16, 1
        %s316 = scalar_select %p315, %s16, 1
        %s317 = smul.addr %s316, 2
        %s318 = scalar_lea.vmem %s3, %s317
        // Predicated region
        $region33: #{bottleneck1d.4} parent=27 // pred_check
          %p319 = pneg %p81
        $region34: #{bottleneck1d.4} parent=27 // pred_check_branch
          %321 = sbr.rel (%p319) target = $region36
        $region35: #{bottleneck1d.4} parent=27 // pred_region
          %s322 = smul.u32 2, %s16
        $region36: #{bottleneck1d.4} parent=27 // pred_fallthru
          _
        // Predicated region
        $region37: #{bottleneck1d.4} parent=27 // pred_check
          %p323 = pneg %p107
        $region38: #{bottleneck1d.4} parent=27 // pred_check_branch
          %325 = sbr.rel (%p323) target = $region40
        $region39: #{bottleneck1d.4} parent=27 // pred_region
          _
        $region40: #{bottleneck1d.4} parent=27 // pred_fallthru
          _
      $region28: #{bottleneck1d.4} parent=5 // pred_fallthru
        _
      %p326 = scmp.le.s32.totalorder 2, %s11
      // Predicated region
      $region41: #{bottleneck1d.4} parent=5 // pred_check
        %p327 = pneg %p326
      $region42: #{bottleneck1d.4} parent=5 // pred_check_branch
        %329 = sbr.rel (%p327) target = $region44
      $region43: #{bottleneck1d.4} parent=5 // pred_region
        %s330 = ssub.s32 %s11, 2
        // Predicated region
        $region45: #{bottleneck1d.4} parent=43 // pred_check
          %p331 = pneg %p87
        $region46: #{bottleneck1d.4} parent=43 // pred_check_branch
          %333 = sbr.rel (%p331) target = $region48
        $region47: #{bottleneck1d.4} parent=43 // pred_region
          %s334 = smul.u32 2, %s17
          %p335 = scmp.lt.s32.totalorder %s334, 3
          %s336 = scalar_select %p335, %s334, 3
          %s337 = smul.addr %s336, 4
          %s338 = scalar_lea.vmem %s2, %s337
        $region48: #{bottleneck1d.4} parent=43 // pred_fallthru
          _
        // Predicated region
        $region49: #{bottleneck1d.4} parent=43 // pred_check
          %p339 = pneg %p113
        $region50: #{bottleneck1d.4} parent=43 // pred_check_branch
          %341 = sbr.rel (%p339) target = $region52
        $region51: #{bottleneck1d.4} parent=43 // pred_region
          %p342 = scmp.lt.s32.totalorder %s17, 1
          %s343 = scalar_select %p342, %s17, 1
          %s344 = smul.addr %s343, 2
          %s345 = scalar_lea.vmem %s3, %s344
        $region52: #{bottleneck1d.4} parent=43 // pred_fallthru
          _
      $region44: #{bottleneck1d.4} parent=5 // pred_fallthru
        _
    $region6: #{bottleneck1d.4} parent=1 // loop_footer
      %s15 = sadd.s32 1, %s11
    $region7: #{bottleneck1d.4} parent=1 // loop_footer_branch
      %10 = sbr.rel target = $region3
    $region8: #{bottleneck1d.4} parent=1 // loop_exit
      _
    %346 = vsyncpa [#allocation3], 1
    %s347 = scalar_lea.sflag [#allocation3], 1
    %348 = vsyncpa %s347, 1

// kernel: bottleneck1d.7
$region0: #{bottleneck1d.7}
  #allocation0 [shape = 'u32[]', space=smem, size = 0x4, offset = 0x4, fixed_abs, tag = 'smem constant byte address 0x4 - core index']
  #allocation1 [shape = 'u32[72,128]{1,0:T(1,128)}', space=vmem, size = 0x9000, scoped, tag = 'internal scratch']
  %s0 = inlined_call_operand.vmem [shape: bf16[32,128], index: 0, kind: input, shape index: {}]
  %s1 = inlined_call_operand.vmem [shape: f32[32,128], index: 1, kind: input, shape index: {}, may-alias: {1,4}]
  %s2 = inlined_call_operand.vmem [shape: f32[1,128], index: 2, kind: input, shape index: {}]
  %s3 = inlined_call_operand.vmem [shape: f32[1,128], index: 3, kind: input, shape index: {}]
  %s4 = inlined_call_operand.vmem [shape: f32[32,128], index: 4, kind: output, shape index: {}, may-alias: {1,4}]
  %s5 = sld [smem:[#allocation0]]
  $region49: #{bottleneck1d.7} parent=0
    _
  %s7 = ssub.s32 1, %s5
  %s8 = scalar_select 0, %s7, %s5
  loop: start=0, step=1, limit=4
  $region2: #{bottleneck1d.7} parent=0 // loop_pre_header
    _
  $region3: #{bottleneck1d.7} parent=0 // loop_header
    %s10 = sphi 0, %s14
    %p11 = scmp.ge.s32.totalorder %s10, 4
    %s20 = sphi 0, %s22
    %s23 = sphi 0, %s20
    %s24 = sphi 0, %s23
    %s40 = sphi 0, %s24
    %s46 = sphi 0, %s48
    %s49 = sphi 0, %s46
    %s50 = sphi 0, %s49
    %s66 = sphi 0, %s50
    %s70 = sphi 0, %s70
    %s72 = sphi 0, %s70
    %s73 = sphi 0, %s72
    %s87 = sphi 0, %s73
    %s91 = sphi 0, %s91
    %s93 = sphi 0, %s91
    %s94 = sphi 0, %s93
    %s108 = sphi 0, %s94
    %s114 = sphi 0, %s116
    %s117 = sphi 0, %s114
    %s118 = sphi 0, %s117
    %s134 = sphi 0, %s118
  $region4: #{bottleneck1d.7} parent=0 // loop_header_branch
    %13 = sbr.rel (%p11) target = $region8
  $region5: #{bottleneck1d.7} parent=0 // loop_body
    %s15 = ssub.s32 %s10, 1
    %s16 = ssub.s32 %s10, 2
    %s17 = sadd.s32 %s10, 1
    %s18 = ssub.s32 %s10, %s17
    %p19 = scmp.eq.s32.totalorder %s18, 0
    %s21 = sadd.s32 %s20, 1
    %s22 = scalar_select %p19, %s20, %s21
    %p25 = pneg %p19
    %p26 = scmp.eq.s32.totalorder %s10, 1
    %p27 = por %p25, %p26
    %p28 = scmp.ne.s32.totalorder %s20, %s23
    %p29 = scmp.eq.s32.totalorder %s10, 0
    %p30 = por %p28, %p29
    %p31 = scmp.ne.s32.totalorder %s20, %s23
    %p32 = scmp.eq.s32.totalorder %s15, 1
    %p33 = por %p31, %p32
    %p34 = scmp.ne.s32.totalorder %s23, %s24
    %p35 = scmp.eq.s32.totalorder %s15, 0
    %p36 = por %p34, %p35
    %p37 = scmp.ne.s32.totalorder %s23, %s24
    %p38 = scmp.eq.s32.totalorder %s16, 1
    %p39 = por %p37, %p38
    %p41 = scmp.ne.s32.totalorder %s24, %s40
    %p42 = scmp.eq.s32.totalorder %s16, 0
    %p43 = por %p41, %p42
    %s44 = ssub.s32 %s10, %s17
    %p45 = scmp.eq.s32.totalorder %s44, 0
    %s47 = sadd.s32 %s46, 1
    %s48 = scalar_select %p45, %s46, %s47
    %p51 = pneg %p45
    %p52 = scmp.eq.s32.totalorder %s10, 1
    %p53 = por %p51, %p52
    %p54 = scmp.ne.s32.totalorder %s46, %s49
    %p55 = scmp.eq.s32.totalorder %s10, 0
    %p56 = por %p54, %p55
    %p57 = scmp.ne.s32.totalorder %s46, %s49
    %p58 = scmp.eq.s32.totalorder %s15, 1
    %p59 = por %p57, %p58
    %p60 = scmp.ne.s32.totalorder %s49, %s50
    %p61 = scmp.eq.s32.totalorder %s15, 0
    %p62 = por %p60, %p61
    %p63 = scmp.ne.s32.totalorder %s49, %s50
    %p64 = scmp.eq.s32.totalorder %s16, 1
    %p65 = por %p63, %p64
    %p67 = scmp.ne.s32.totalorder %s50, %s66
    %p68 = scmp.eq.s32.totalorder %s16, 0
    %p69 = por %p67, %p68
    %s71 = sadd.s32 %s70, 1
    %p74 = scmp.eq.s32.totalorder %s10, 1
    %p75 = scmp.ne.s32.totalorder %s70, %s72
    %p76 = scmp.eq.s32.totalorder %s10, 0
    %p77 = por %p75, %p76
    %p78 = scmp.ne.s32.totalorder %s70, %s72
    %p79 = scmp.eq.s32.totalorder %s15, 1
    %p80 = por %p78, %p79
    %p81 = scmp.ne.s32.totalorder %s72, %s73
    %p82 = scmp.eq.s32.totalorder %s15, 0
    %p83 = por %p81, %p82
    %p84 = scmp.ne.s32.totalorder %s72, %s73
    %p85 = scmp.eq.s32.totalorder %s16, 1
    %p86 = por %p84, %p85
    %p88 = scmp.ne.s32.totalorder %s73, %s87
    %p89 = scmp.eq.s32.totalorder %s16, 0
    %p90 = por %p88, %p89
    %s92 = sadd.s32 %s91, 1
    %p95 = scmp.eq.s32.totalorder %s10, 1
    %p96 = scmp.ne.s32.totalorder %s91, %s93
    %p97 = scmp.eq.s32.totalorder %s10, 0
    %p98 = por %p96, %p97
    %p99 = scmp.ne.s32.totalorder %s91, %s93
    %p100 = scmp.eq.s32.totalorder %s15, 1
    %p101 = por %p99, %p100
    %p102 = scmp.ne.s32.totalorder %s93, %s94
    %p103 = scmp.eq.s32.totalorder %s15, 0
    %p104 = por %p102, %p103
    %p105 = scmp.ne.s32.totalorder %s93, %s94
    %p106 = scmp.eq.s32.totalorder %s16, 1
    %p107 = por %p105, %p106
    %p109 = scmp.ne.s32.totalorder %s94, %s108
    %p110 = scmp.eq.s32.totalorder %s16, 0
    %p111 = por %p109, %p110
    %s112 = ssub.s32 %s10, %s17
    %p113 = scmp.eq.s32.totalorder %s112, 0
    %s115 = sadd.s32 %s114, 1
    %s116 = scalar_select %p113, %s114, %s115
    %p119 = pneg %p113
    %p120 = scmp.eq.s32.totalorder %s10, 1
    %p121 = por %p119, %p120
    %p122 = scmp.ne.s32.totalorder %s114, %s117
    %p123 = scmp.eq.s32.totalorder %s10, 0
    %p124 = por %p122, %p123
    %p125 = scmp.ne.s32.totalorder %s114, %s117
    %p126 = scmp.eq.s32.totalorder %s15, 1
    %p127 = por %p125, %p126
    %p128 = scmp.ne.s32.totalorder %s117, %s118
    %p129 = scmp.eq.s32.totalorder %s15, 0
    %p130 = por %p128, %p129
    %p131 = scmp.ne.s32.totalorder %s117, %s118
    %p132 = scmp.eq.s32.totalorder %s16, 1
    %p133 = por %p131, %p132
    %p135 = scmp.ne.s32.totalorder %s118, %s134
    %p136 = scmp.eq.s32.totalorder %s16, 0
    %p137 = por %p135, %p136
    %p138 = scmp.le.s32.totalorder 1, %s10
    %p139 = scmp.lt.s32.totalorder %s10, 3
    %p140 = pnand %p138, %p139
    %p141 = pneg %p140
    // Predicated region
    $region9: #{bottleneck1d.7} parent=5 // pred_check
      _
    $region10: #{bottleneck1d.7} parent=5 // pred_check_branch
      %143 = sbr.rel (%p140) target = $region12
    $region11: #{bottleneck1d.7} parent=5 // pred_region
      %s144 = ssub.s32 %s10, 1
      // Predicated region
      $region13: #{bottleneck1d.7} parent=11 // pred_check
        %p145 = pneg %p83
      $region14: #{bottleneck1d.7} parent=11 // pred_check_branch
        %147 = sbr.rel (%p145) target = $region16
      $region15: #{bottleneck1d.7} parent=11 // pred_region
        _
      $region16: #{bottleneck1d.7} parent=11 // pred_fallthru
        _
      // Predicated region
      $region17: #{bottleneck1d.7} parent=11 // pred_check
        %p148 = pneg %p104
      $region18: #{bottleneck1d.7} parent=11 // pred_check_branch
        %150 = sbr.rel (%p148) target = $region20
      $region19: #{bottleneck1d.7} parent=11 // pred_region
        _
      $region20: #{bottleneck1d.7} parent=11 // pred_fallthru
        _
    $region12: #{bottleneck1d.7} parent=5 // pred_fallthru
      _
    %p151 = scmp.lt.s32.totalorder %s10, 2
    // Predicated region
    $region21: #{bottleneck1d.7} parent=5 // pred_check
      %p152 = pneg %p151
    $region22: #{bottleneck1d.7} parent=5 // pred_check_branch
      %154 = sbr.rel (%p152) target = $region24
    $region23: #{bottleneck1d.7} parent=5 // pred_region
      // Predicated region
      $region25: #{bottleneck1d.7} parent=23 // pred_check
        %p155 = pneg %p30
      $region26: #{bottleneck1d.7} parent=23 // pred_check_branch
        %157 = sbr.rel (%p155) target = $region28
      $region27: #{bottleneck1d.7} parent=23 // pred_region
        %s158 = smul.u32 2, %s10
        %p159 = scmp.lt.s32.totalorder %s158, 3
        %s160 = scalar_select %p159, %s158, 3
        %s161 = smul.addr %s160, 4
        %s162 = scalar_lea.vmem %s0, %s161
        %s163 = smul.u32 2, %s10
      $region28: #{bottleneck1d.7} parent=23 // pred_fallthru
        _
      // Predicated region
      $region29: #{bottleneck1d.7} parent=23 // pred_check
        %p164 = pneg %p56
      $region30: #{bottleneck1d.7} parent=23 // pred_check_branch
        %166 = sbr.rel (%p164) target = $region32
      $region31: #{bottleneck1d.7} parent=23 // pred_region
        %s167 = smul.u32 2, %s10
        %p168 = scmp.lt.s32.totalorder %s167, 3
        %s169 = scalar_select %p168, %s167, 3
        %s170 = smul.addr %s169, 8
        %s171 = scalar_lea.vmem %s1, %s170
        %s172 = smul.u32 2, %s10
      $region32: #{bottleneck1d.7} parent=23 // pred_fallthru
        _
    $region24: #{bottleneck1d.7} parent=5 // pred_fallthru
      _
    %p173 = scmp.le.s32.totalorder 1, %s10
    %p174 = scmp.lt.s32.totalorder %s10, 3
    %p175 = pnand %p173, %p174
    %p176 = pneg %p175
    // Predicated region
    $region33: #{bottleneck1d.7} parent=5 // pred_check
      _
    $region34: #{bottleneck1d.7} parent=5 // pred_check_branch
      %178 = sbr.rel (%p175) target = $region36
    $region35: #{bottleneck1d.7} parent=5 // pred_region
      %s179 = ssub.s32 %s10, 1
      %s180 = smul.u32 2, %s15
      %p181 = scmp.lt.s32.totalorder %s180, 3
      %s182 = scalar_select %p181, %s180, 3
      %s183 = smul.addr %s182, 4
      %s184 = scalar_lea.vmem %s0, %s183
      %p185 = pneg %p36
      %p186 = pneg %p33
      %s187 = smul.u32 2, %s15
      %p188 = scmp.lt.s32.totalorder %s187, 3
      %s189 = scalar_select %p188, %s187, 3
      %s190 = smul.addr %s189, 8
      %s191 = scalar_lea.vmem %s1, %s190
      %p192 = pneg %p62
      %p193 = pneg %p59
      %p194 = pneg %p83
      %p195 = pneg %p80
      %p196 = pneg %p104
      %p197 = pneg %p101
      %p198 = pneg %p130
      %p199 = pneg %p127
      %s200 = smul.u32 2, %s15
      %p201 = scmp.lt.s32.totalorder %s200, 3
      %s202 = scalar_select %p201, %s200, 3
      %s203 = smul.addr %s202, 8
      %s204 = scalar_lea.vmem %s4, %s203
      %s205 = smul.u32 2, %s15
      %p206 = scmp.lt.s32.totalorder %s205, 3
      %s207 = scalar_select %p206, %s205, 3
      %s208 = smul.addr %s207, 4
      %s209 = scalar_lea.vmem %s0, %s208
      %s210 = smul.u32 2, %s15
      %s211 = smul.u32 2, %s15
      %p212 = scmp.lt.s32.totalorder %s211, 3
      %s213 = scalar_select %p212, %s211, 3
      %s214 = smul.addr %s213, 8
      %s215 = scalar_lea.vmem %s1, %s214
      %s216 = smul.u32 2, %s15
      %s217 = smul.u32 2, %s15
      %p218 = scmp.lt.s32.totalorder %s217, 3
      %s219 = scalar_select %p218, %s217, 3
      %s220 = smul.addr %s219, 8
      %s221 = scalar_lea.vmem %s4, %s220
      %s222 = smul.u32 2, %s15
      %v223 = vld [vmem:[%s209] sm:$0xf]
      %v224 = vld [vmem:[%s209 + $0x4] sm:$0xf]
      %v225 = vunpack.c.l.bf16 %v223
      %v226 = vunpack.c.l.bf16 %v224
      %v227 = vld [vmem:[%s2] sm:$0x1]
      %v229 = vperm.slane %v227, 0
      %v231 = vmul.f32 %v225, %v229
      %v232 = vmul.f32 %v226, %v229
      %v233 = vld [vmem:[%s3] sm:$0x1]
      %v235 = vperm.slane %v233, 0
      %v237 = vadd.f32 %v231, %v235
      %v238 = vadd.f32 %v232, %v235
      %v239 = vld [vmem:[%s215] sm:$0xff]
      %v240 = vld [vmem:[%s215 + $0x8] sm:$0xff]
      %v241 = vadd.f32 %v237, %v239
      %v242 = vadd.f32 %v238, %v240
      %v243 = vmax.f32 %v241, 0.0
      %v244 = vmax.f32 %v242, 0.0
      %245 = vst [vmem:[%s221] sm:$0xff] %v243
      %246 = vst [vmem:[%s221 + $0x8] sm:$0xff] %v244
      %s247 = smul.u32 2, %s15
      %p248 = scmp.lt.s32.totalorder %s247, 3
      %s249 = scalar_select %p248, %s247, 3
      %s250 = smul.addr %s249, 8
      %s251 = scalar_lea.vmem %s4, %s250
      // Predicated region
      $region37: #{bottleneck1d.7} parent=35 // pred_check
        %p252 = pneg %p127
      $region38: #{bottleneck1d.7} parent=35 // pred_check_branch
        %254 = sbr.rel (%p252) target = $region40
      $region39: #{bottleneck1d.7} parent=35 // pred_region
        %s255 = smul.u32 2, %s15
      $region40: #{bottleneck1d.7} parent=35 // pred_fallthru
        _
    $region36: #{bottleneck1d.7} parent=5 // pred_fallthru
      _
    %p256 = scmp.le.s32.totalorder 2, %s10
    // Predicated region
    $region41: #{bottleneck1d.7} parent=5 // pred_check
      %p257 = pneg %p256
    $region42: #{bottleneck1d.7} parent=5 // pred_check_branch
      %259 = sbr.rel (%p257) target = $region44
    $region43: #{bottleneck1d.7} parent=5 // pred_region
      %s260 = ssub.s32 %s10, 2
      // Predicated region
      $region45: #{bottleneck1d.7} parent=43 // pred_check
        %p261 = pneg %p133
      $region46: #{bottleneck1d.7} parent=43 // pred_check_branch
        %263 = sbr.rel (%p261) target = $region48
      $region47: #{bottleneck1d.7} parent=43 // pred_region
        %s264 = smul.u32 2, %s16
        %p265 = scmp.lt.s32.totalorder %s264, 3
        %s266 = scalar_select %p265, %s264, 3
        %s267 = smul.addr %s266, 8
        %s268 = scalar_lea.vmem %s4, %s267
      $region48: #{bottleneck1d.7} parent=43 // pred_fallthru
        _
    $region44: #{bottleneck1d.7} parent=5 // pred_fallthru
      _
  $region6: #{bottleneck1d.7} parent=0 // loop_footer
    %s14 = sadd.s32 1, %s10
  $region7: #{bottleneck1d.7} parent=0 // loop_footer_branch
    %9 = sbr.rel target = $region3
  $region8: #{bottleneck1d.7} parent=0 // loop_exit
    _

// kernel: bottleneck1d.5
$region0: #{bottleneck1d.5}
  #allocation0 [shape = 'u32[]', space=smem, size = 0x4, offset = 0x4, fixed_abs, tag = 'smem constant byte address 0x4 - core index']
  #allocation1 [shape = 'u32[72,128]{1,0:T(1,128)}', space=vmem, size = 0x9000, scoped, tag = 'internal scratch']
  %s0 = inlined_call_operand.vmem [shape: bf16[2,16,128], index: 0, kind: input, shape index: {}, may-alias: {0,1,2}]
  %s1 = inlined_call_operand.vmem [shape: bf16[2,16,128], index: 1, kind: input, shape index: {}, may-alias: {0,1,2}]
  %s2 = inlined_call_operand.vmem [shape: bf16[2,16,128], index: 2, kind: input, shape index: {}, may-alias: {0,1,2}]
  %s3 = inlined_call_operand.vmem [shape: f32[1,128], index: 3, kind: input, shape index: {}]
  %s4 = inlined_call_operand.vmem [shape: f32[1,128], index: 4, kind: input, shape index: {}]
  %s5 = inlined_call_operand.hbm [shape: bf16[384,128], index: 5, kind: input, shape index: {}]
  %s6 = inlined_call_operand.vmem [shape: bf16[2,16,128], index: 6, kind: output, shape index: {0}]
  %s7 = inlined_call_operand.vmem [shape: f32[2,2,128], index: 7, kind: output, shape index: {1}]
  %8 = xla_tuple %s6, %s7
  %s9 = sld [smem:[#allocation0]]
  $region69: #{bottleneck1d.5} parent=0
    _
  %s11 = ssub.s32 1, %s9
  %s12 = scalar_select 0, %s11, %s9
  $region1: #{bottleneck1d.5} parent=0
    #allocation2 [shape = 'u8[98304]{0}', space=vmem, size = 0x18000, scoped, tag = 'input window, operand 5, single buffered']
    #allocation3 [shape = 's32[2]{0}', space=sflag, size = 0x8, scoped, tag = 'scoped memory for bottleneck1d.5']
    %13 = vsyncpa [#allocation3], 0
    loop: start=0, step=1, limit=4
    $region2: #{bottleneck1d.5} parent=1 // loop_pre_header
      _
    $region3: #{bottleneck1d.5} parent=1 // loop_header
      %s15 = sphi 0, %s19
      %p16 = scmp.ge.s32.totalorder %s15, 4
      %s22 = sphi 0, %s34
      %s23 = sphi 0, %s30
      %s24 = sphi 0, %s22
      %s25 = sphi 0, %s23
      %s26 = sphi 0, %s24
      %s27 = sphi 0, %s25
      %s39 = sphi 0, %s41
      %s42 = sphi 0, %s39
      %s43 = sphi 0, %s42
      %s59 = sphi 0, %s43
      %s75 = sphi 0, %s77
      %s78 = sphi 0, %s75
      %s79 = sphi 0, %s78
      %s95 = sphi 0, %s79
      %s111 = sphi 0, %s113
      %s114 = sphi 0, %s111
      %s115 = sphi 0, %s114
      %s131 = sphi 0, %s115
      %s135 = sphi 0, %s135
      %s137 = sphi 0, %s135
      %s138 = sphi 0, %s137
      %s152 = sphi 0, %s138
      %s156 = sphi 0, %s156
      %s158 = sphi 0, %s156
      %s159 = sphi 0, %s158
      %s173 = sphi 0, %s159
      %s177 = sphi 0, %s177
      %s179 = sphi 0, %s177
      %s180 = sphi 0, %s179
      %s194 = sphi 0, %s180
      %s202 = sphi 0, %s204
      %s205 = sphi 0, %s202
      %s206 = sphi 0, %s205
      %s222 = sphi 0, %s206
      %s230 = sphi 0, %s232
      %s233 = sphi 0, %s230
      %s234 = sphi 0, %s233
      %s250 = sphi 0, %s234
    $region4: #{bottleneck1d.5} parent=1 // loop_header_branch
      %18 = sbr.rel (%p16) target = $region8
    $region5: #{bottleneck1d.5} parent=1 // loop_body
      %s20 = ssub.s32 %s15, 1
      %s21 = ssub.s32 %s15, 2
      %s28 = sadd.s32 1, %s23
      %p29 = scmp.ge.s32.totalorder %s28, 1
      %s30 = scalar_select %p29, 0, %s28
      %s31 = sadd.s32 1, %s22
      %s32 = scalar_select %p29, %s31, %s22
      %p33 = scmp.ge.s32.totalorder %s32, 2
      %s34 = scalar_select %p33, 0, %s32
      %s35 = ssub.s32 %s22, %s34
      %s36 = ssub.s32 %s23, %s30
      %s37 = sor.u32 %s35, %s36
      %p38 = scmp.eq.s32.totalorder %s37, 0
      %s40 = sadd.s32 %s39, 1
      %s41 = scalar_select %p38, %s39, %s40
      %p44 = pneg %p38
      %p45 = scmp.eq.s32.totalorder %s15, 1
      %p46 = por %p44, %p45
      %p47 = scmp.ne.s32.totalorder %s39, %s42
      %p48 = scmp.eq.s32.totalorder %s15, 0
      %p49 = por %p47, %p48
      %p50 = scmp.ne.s32.totalorder %s39, %s42
      %p51 = scmp.eq.s32.totalorder %s20, 1
      %p52 = por %p50, %p51
      %p53 = scmp.ne.s32.totalorder %s42, %s43
      %p54 = scmp.eq.s32.totalorder %s20, 0
      %p55 = por %p53, %p54
      %p56 = scmp.ne.s32.totalorder %s42, %s43
      %p57 = scmp.eq.s32.totalorder %s21, 1
      %p58 = por %p56, %p57
      %p60 = scmp.ne.s32.totalorder %s43, %s59
      %p61 = scmp.eq.s32.totalorder %s21, 0
      %p62 = por %p60, %p61
      %s63 = smul.u32 %s23, 2
      %s64 = ssub.s32 %s63, 1
      %p65 = scmp.gt.s32.totalorder %s64, 0
      %s66 = scalar_select %p65, %s64, 0
      %s67 = smul.u32 %s30, 2
      %s68 = ssub.s32 %s67, 1
      %p69 = scmp.gt.s32.totalorder %s68, 0
      %s70 = scalar_select %p69, %s68, 0
      %s71 = ssub.s32 %s22, %s34
      %s72 = ssub.s32 %s66, %s70
      %s73 = sor.u32 %s71, %s72
      %p74 = scmp.eq.s32.totalorder %s73, 0
      %s76 = sadd.s32 %s75, 1
      %s77 = scalar_select %p74, %s75, %s76
      %p80 = pneg %p74
      %p81 = scmp.eq.s32.totalorder %s15, 1
      %p82 = por %p80, %p81
      %p83 = scmp.ne.s32.totalorder %s75, %s78
      %p84 = scmp.eq.s32.totalorder %s15, 0
      %p85 = por %p83, %p84
      %p86 = scmp.ne.s32.totalorder %s75, %s78
      %p87 = scmp.eq.s32.totalorder %s20, 1
      %p88 = por %p86, %p87
      %p89 = scmp.ne.s32.totalorder %s78, %s79
      %p90 = scmp.eq.s32.totalorder %s20, 0
      %p91 = por %p89, %p90
      %p92 = scmp.ne.s32.totalorder %s78, %s79
      %p93 = scmp.eq.s32.totalorder %s21, 1
      %p94 = por %p92, %p93
      %p96 = scmp.ne.s32.totalorder %s79, %s95
      %p97 = scmp.eq.s32.totalorder %s21, 0
      %p98 = por %p96, %p97
      %s99 = sadd.s32 %s23, 1
      %s100 = smul.u32 %s99, 2
      %p101 = scmp.lt.s32.totalorder %s100, 1
      %s102 = scalar_select %p101, %s100, 1
      %s103 = sadd.s32 %s30, 1
      %s104 = smul.u32 %s103, 2
      %p105 = scmp.lt.s32.totalorder %s104, 1
      %s106 = scalar_select %p105, %s104, 1
      %s107 = ssub.s32 %s22, %s34
      %s108 = ssub.s32 %s102, %s106
      %s109 = sor.u32 %s107, %s108
      %p110 = scmp.eq.s32.totalorder %s109, 0
      %s112 = sadd.s32 %s111, 1
      %s113 = scalar_select %p110, %s111, %s112
      %p116 = pneg %p110
      %p117 = scmp.eq.s32.totalorder %s15, 1
      %p118 = por %p116, %p117
      %p119 = scmp.ne.s32.totalorder %s111, %s114
      %p120 = scmp.eq.s32.totalorder %s15, 0
      %p121 = por %p119, %p120
      %p122 = scmp.ne.s32.totalorder %s111, %s114
      %p123 = scmp.eq.s32.totalorder %s20, 1
      %p124 = por %p122, %p123
      %p125 = scmp.ne.s32.totalorder %s114, %s115
      %p126 = scmp.eq.s32.totalorder %s20, 0
      %p127 = por %p125, %p126
      %p128 = scmp.ne.s32.totalorder %s114, %s115
      %p129 = scmp.eq.s32.totalorder %s21, 1
      %p130 = por %p128, %p129
      %p132 = scmp.ne.s32.totalorder %s115, %s131
      %p133 = scmp.eq.s32.totalorder %s21, 0
      %p134 = por %p132, %p133
      %s136 = sadd.s32 %s135, 1
      %p139 = scmp.eq.s32.totalorder %s15, 1
      %p140 = scmp.ne.s32.totalorder %s135, %s137
      %p141 = scmp.eq.s32.totalorder %s15, 0
      %p142 = por %p140, %p141
      %p143 = scmp.ne.s32.totalorder %s135, %s137
      %p144 = scmp.eq.s32.totalorder %s20, 1
      %p145 = por %p143, %p144
      %p146 = scmp.ne.s32.totalorder %s137, %s138
      %p147 = scmp.eq.s32.totalorder %s20, 0
      %p148 = por %p146, %p147
      %p149 = scmp.ne.s32.totalorder %s137, %s138
      %p150 = scmp.eq.s32.totalorder %s21, 1
      %p151 = por %p149, %p150
      %p153 = scmp.ne.s32.totalorder %s138, %s152
      %p154 = scmp.eq.s32.totalorder %s21, 0
      %p155 = por %p153, %p154
      %s157 = sadd.s32 %s156, 1
      %p160 = scmp.eq.s32.totalorder %s15, 1
      %p161 = scmp.ne.s32.totalorder %s156, %s158
      %p162 = scmp.eq.s32.totalorder %s15, 0
      %p163 = por %p161, %p162
      %p164 = scmp.ne.s32.totalorder %s156, %s158
      %p165 = scmp.eq.s32.totalorder %s20, 1
      %p166 = por %p164, %p165
      %p167 = scmp.ne.s32.totalorder %s158, %s159
      %p168 = scmp.eq.s32.totalorder %s20, 0
      %p169 = por %p167, %p168
      %p170 = scmp.ne.s32.totalorder %s158, %s159
      %p171 = scmp.eq.s32.totalorder %s21, 1
      %p172 = por %p170, %p171
      %p174 = scmp.ne.s32.totalorder %s159, %s173
      %p175 = scmp.eq.s32.totalorder %s21, 0
      %p176 = por %p174, %p175
      %s178 = sadd.s32 %s177, 1
      %p181 = scmp.eq.s32.totalorder %s15, 1
      %p182 = scmp.ne.s32.totalorder %s177, %s179
      %p183 = scmp.eq.s32.totalorder %s15, 0
      %p184 = por %p182, %p183
      %p185 = scmp.ne.s32.totalorder %s177, %s179
      %p186 = scmp.eq.s32.totalorder %s20, 1
      %p187 = por %p185, %p186
      %p188 = scmp.ne.s32.totalorder %s179, %s180
      %p189 = scmp.eq.s32.totalorder %s20, 0
      %p190 = por %p188, %p189
      %p191 = scmp.ne.s32.totalorder %s179, %s180
      %p192 = scmp.eq.s32.totalorder %s21, 1
      %p193 = por %p191, %p192
      %p195 = scmp.ne.s32.totalorder %s180, %s194
      %p196 = scmp.eq.s32.totalorder %s21, 0
      %p197 = por %p195, %p196
      %s198 = ssub.s32 %s22, %s34
      %s199 = ssub.s32 %s23, %s30
      %s200 = sor.u32 %s198, %s199
      %p201 = scmp.eq.s32.totalorder %s200, 0
      %s203 = sadd.s32 %s202, 1
      %s204 = scalar_select %p201, %s202, %s203
      %p207 = pneg %p201
      %p208 = scmp.eq.s32.totalorder %s15, 1
      %p209 = por %p207, %p208
      %p210 = scmp.ne.s32.totalorder %s202, %s205
      %p211 = scmp.eq.s32.totalorder %s15, 0
      %p212 = por %p210, %p211
      %p213 = scmp.ne.s32.totalorder %s202, %s205
      %p214 = scmp.eq.s32.totalorder %s20, 1
      %p215 = por %p213, %p214
      %p216 = scmp.ne.s32.totalorder %s205, %s206
      %p217 = scmp.eq.s32.totalorder %s20, 0
      %p218 = por %p216, %p217
      %p219 = scmp.ne.s32.totalorder %s205, %s206
      %p220 = scmp.eq.s32.totalorder %s21, 1
      %p221 = por %p219, %p220
      %p223 = scmp.ne.s32.totalorder %s206, %s222
      %p224 = scmp.eq.s32.totalorder %s21, 0
      %p225 = por %p223, %p224
      %s226 = sadd.s32 %s22, %s23
      %s227 = sadd.s32 %s34, %s30
      %s228 = ssub.s32 %s226, %s227
      %p229 = scmp.eq.s32.totalorder %s228, 0
      %s231 = sadd.s32 %s230, 1
      %s232 = scalar_select %p229, %s230, %s231
      %p235 = pneg %p229
      %p236 = scmp.eq.s32.totalorder %s15, 1
      %p237 = por %p235, %p236
      %p238 = scmp.ne.s32.totalorder %s230, %s233
      %p239 = scmp.eq.s32.totalorder %s15, 0
      %p240 = por %p238, %p239
      %p241 = scmp.ne.s32.totalorder %s230, %s233
      %p242 = scmp.eq.s32.totalorder %s20, 1
      %p243 = por %p241, %p242
      %p244 = scmp.ne.s32.totalorder %s233, %s234
      %p245 = scmp.eq.s32.totalorder %s20, 0
      %p246 = por %p244, %p245
      %p247 = scmp.ne.s32.totalorder %s233, %s234
      %p248 = scmp.eq.s32.totalorder %s21, 1
      %p249 = por %p247, %p248
      %p251 = scmp.ne.s32.totalorder %s234, %s250
      %p252 = scmp.eq.s32.totalorder %s21, 0
      %p253 = por %p251, %p252
      %p254 = scmp.le.s32.totalorder 1, %s15
      %p255 = scmp.lt.s32.totalorder %s15, 3
      %p256 = pnand %p254, %p255
      %p257 = pneg %p256
      // Predicated region
      $region9: #{bottleneck1d.5} parent=5 // pred_check
        _
      $region10: #{bottleneck1d.5} parent=5 // pred_check_branch
        %259 = sbr.rel (%p256) target = $region12
      $region11: #{bottleneck1d.5} parent=5 // pred_region
        %s260 = ssub.s32 %s15, 1
        // Predicated region
        $region13: #{bottleneck1d.5} parent=11 // pred_check
          %p261 = pneg %p148
        $region14: #{bottleneck1d.5} parent=11 // pred_check_branch
          %263 = sbr.rel (%p261) target = $region16
        $region15: #{bottleneck1d.5} parent=11 // pred_region
          _
        $region16: #{bottleneck1d.5} parent=11 // pred_fallthru
          _
        // Predicated region
        $region17: #{bottleneck1d.5} parent=11 // pred_check
          %p264 = pneg %p169
        $region18: #{bottleneck1d.5} parent=11 // pred_check_branch
          %266 = sbr.rel (%p264) target = $region20
        $region19: #{bottleneck1d.5} parent=11 // pred_region
          _
        $region20: #{bottleneck1d.5} parent=11 // pred_fallthru
          _
        // Predicated region
        $region21: #{bottleneck1d.5} parent=11 // pred_check
          %p267 = pneg %p190
        $region22: #{bottleneck1d.5} parent=11 // pred_check_branch
          %269 = sbr.rel (%p267) target = $region24
        $region23: #{bottleneck1d.5} parent=11 // pred_region
          %271 = vsyncadd [#allocation3], 0
          %s272 = sshll.u32 %s5, 4
          %s273 = int_to_ptr.hbm [resolvable:$true] %s272
          %s274 = sshll.u32 [#allocation2], 4
          %s275 = int_to_ptr.vmem [resolvable:$true] %s274
          %280 = dma.hbm_to_vmem [thread:$0]  %s273, 3072, %s275, [#allocation3], 64, 64, 4
        $region24: #{bottleneck1d.5} parent=11 // pred_fallthru
          _
      $region12: #{bottleneck1d.5} parent=5 // pred_fallthru
        _
      %p281 = scmp.lt.s32.totalorder %s15, 2
      // Predicated region
      $region25: #{bottleneck1d.5} parent=5 // pred_check
        %p282 = pneg %p281
      $region26: #{bottleneck1d.5} parent=5 // pred_check_branch
        %284 = sbr.rel (%p282) target = $region28
      $region27: #{bottleneck1d.5} parent=5 // pred_region
        // Predicated region
        $region29: #{bottleneck1d.5} parent=27 // pred_check
          %p285 = pneg %p49
        $region30: #{bottleneck1d.5} parent=27 // pred_check_branch
          %287 = sbr.rel (%p285) target = $region32
        $region31: #{bottleneck1d.5} parent=27 // pred_region
          %s288 = smul.u32 2, %s23
          %p289 = scmp.lt.s32.totalorder %s22, 1
          %s290 = scalar_select %p289, %s22, 1
          %p291 = scmp.lt.s32.totalorder %s288, 1
          %s292 = scalar_select %p291, %s288, 1
          %s293 = smul.addr %s290, 2
          %s294 = sadd.s32 %s292, %s293
          %s295 = smul.addr %s294, 4
          %s296 = scalar_lea.vmem %s0, %s295
          %s297 = smul.u32 2, %s23
        $region32: #{bottleneck1d.5} parent=27 // pred_fallthru
          _
        // Predicated region
        $region33: #{bottleneck1d.5} parent=27 // pred_check
          %p298 = pneg %p85
        $region34: #{bottleneck1d.5} parent=27 // pred_check_branch
          %300 = sbr.rel (%p298) target = $region36
        $region35: #{bottleneck1d.5} parent=27 // pred_region
          %s301 = smul.u32 %s23, 2
          %s302 = ssub.s32 %s301, 1
          %p303 = scmp.gt.s32.totalorder %s302, 0
          %s304 = scalar_select %p303, %s302, 0
          %p305 = scmp.lt.s32.totalorder %s22, 1
          %s306 = scalar_select %p305, %s22, 1
          %p307 = scmp.lt.s32.totalorder %s304, 1
          %s308 = scalar_select %p307, %s304, 1
          %s309 = smul.addr %s306, 2
          %s310 = sadd.s32 %s308, %s309
          %s311 = smul.addr %s310, 4
          %s312 = scalar_lea.vmem %s1, %s311
          %s313 = smul.u32 %s23, 2
          %s314 = ssub.s32 %s313, 1
          %p315 = scmp.gt.s32.totalorder %s314, 0
          %s316 = scalar_select %p315, %s314, 0
        $region36: #{bottleneck1d.5} parent=27 // pred_fallthru
          _
        // Predicated region
        $region37: #{bottleneck1d.5} parent=27 // pred_check
          %p317 = pneg %p121
        $region38: #{bottleneck1d.5} parent=27 // pred_check_branch
          %319 = sbr.rel (%p317) target = $region40
        $region39: #{bottleneck1d.5} parent=27 // pred_region
          %s320 = sadd.s32 %s23, 1
          %s321 = smul.u32 %s320, 2
          %p322 = scmp.lt.s32.totalorder %s321, 1
          %s323 = scalar_select %p322, %s321, 1
          %p324 = scmp.lt.s32.totalorder %s22, 1
          %s325 = scalar_select %p324, %s22, 1
          %p326 = scmp.lt.s32.totalorder %s323, 1
          %s327 = scalar_select %p326, %s323, 1
          %s328 = smul.addr %s325, 2
          %s329 = sadd.s32 %s327, %s328
          %s330 = smul.addr %s329, 4
          %s331 = scalar_lea.vmem %s2, %s330
          %s332 = sadd.s32 %s23, 1
          %s333 = smul.u32 %s332, 2
          %p334 = scmp.lt.s32.totalorder %s333, 1
          %s335 = scalar_select %p334, %s333, 1
        $region40: #{bottleneck1d.5} parent=27 // pred_fallthru
          _
      $region28: #{bottleneck1d.5} parent=5 // pred_fallthru
        _
      %p336 = scmp.le.s32.totalorder 1, %s15
      %p337 = scmp.lt.s32.totalorder %s15, 3
      %p338 = pnand %p336, %p337
      %p339 = pneg %p338
      // Predicated region
      $region41: #{bottleneck1d.5} parent=5 // pred_check
        _
      $region42: #{bottleneck1d.5} parent=5 // pred_check_branch
        %341 = sbr.rel (%p338) target = $region44
      $region43: #{bottleneck1d.5} parent=5 // pred_region
        %s342 = ssub.s32 %s15, 1
        // Predicated region
        $region45: #{bottleneck1d.5} parent=43 // pred_check
          %p343 = pneg %p190
        $region46: #{bottleneck1d.5} parent=43 // pred_check_branch
          %345 = sbr.rel (%p343) target = $region48
        $region47: #{bottleneck1d.5} parent=43 // pred_region
          %347 = dma.done [#allocation3], 3072
        $region48: #{bottleneck1d.5} parent=43 // pred_fallthru
          _
        %s348 = smul.u32 2, %s25
        %p349 = scmp.lt.s32.totalorder %s24, 1
        %s350 = scalar_select %p349, %s24, 1
        %p351 = scmp.lt.s32.totalorder %s348, 1
        %s352 = scalar_select %p351, %s348, 1
        %s353 = smul.addr %s350, 2
        %s354 = sadd.s32 %s352, %s353
        %s355 = smul.addr %s354, 4
        %s356 = scalar_lea.vmem %s0, %s355
        %p357 = pneg %p55
        %p358 = pneg %p52
        %s359 = smul.u32 %s25, 2
        %s360 = ssub.s32 %s359, 1
        %p361 = scmp.gt.s32.totalorder %s360, 0
        %s362 = scalar_select %p361, %s360, 0
        %p363 = scmp.lt.s32.totalorder %s24, 1
        %s364 = scalar_select %p363, %s24, 1
        %p365 = scmp.lt.s32.totalorder %s362, 1
        %s366 = scalar_select %p365, %s362, 1
        %s367 = smul.addr %s364, 2
        %s368 = sadd.s32 %s366, %s367
        %s369 = smul.addr %s368, 4
        %s370 = scalar_lea.vmem %s1, %s369
        %p371 = pneg %p91
        %p372 = pneg %p88
        %s373 = sadd.s32 %s25, 1
        %s374 = smul.u32 %s373, 2
        %p375 = scmp.lt.s32.totalorder %s374, 1
        %s376 = scalar_select %p375, %s374, 1
        %p377 = scmp.lt.s32.totalorder %s24, 1
        %s378 = scalar_select %p377, %s24, 1
        %p379 = scmp.lt.s32.totalorder %s376, 1
        %s380 = scalar_select %p379, %s376, 1
        %s381 = smul.addr %s378, 2
        %s382 = sadd.s32 %s380, %s381
        %s383 = smul.addr %s382, 4
        %s384 = scalar_lea.vmem %s2, %s383
        %p385 = pneg %p127
        %p386 = pneg %p124
        %p387 = pneg %p148
        %p388 = pneg %p145
        %p389 = pneg %p169
        %p390 = pneg %p166
        %p391 = pneg %p190
        %p392 = pneg %p187
        %p393 = pneg %p218
        %p394 = pneg %p215
        %s395 = smul.u32 2, %s25
        %p396 = scmp.lt.s32.totalorder %s24, 1
        %s397 = scalar_select %p396, %s24, 1
        %p398 = scmp.lt.s32.totalorder %s395, 1
        %s399 = scalar_select %p398, %s395, 1
        %s400 = smul.addr %s397, 2
        %s401 = sadd.s32 %s399, %s400
        %s402 = smul.addr %s401, 4
        %s403 = scalar_lea.vmem %s6, %s402
        %p404 = pneg %p246
        %p405 = pneg %p243
        %s406 = sadd.s32 %s24, %s25
        %p407 = scmp.lt.s32.totalorder %s406, 1
        %s408 = scalar_select %p407, %s406, 1
        %s409 = smul.addr %s408, 2
        %s410 = scalar_lea.vmem %s7, %s409
        %s411 = smul.u32 2, %s25
        %p412 = scmp.lt.s32.totalorder %s24, 1
        %s413 = scalar_select %p412, %s24, 1
        %p414 = scmp.lt.s32.totalorder %s411, 1
        %s415 = scalar_select %p414, %s411, 1
        %s416 = smul.addr %s413, 2
        %s417 = sadd.s32 %s415, %s416
        %s418 = smul.addr %s417, 4
        %s419 = scalar_lea.vmem %s0, %s418
        %s420 = smul.u32 2, %s25
        %s421 = smul.u32 %s25, 2
        %s422 = ssub.s32 %s421, 1
        %p423 = scmp.gt.s32.totalorder %s422, 0
        %s424 = scalar_select %p423, %s422, 0
        %p425 = scmp.lt.s32.totalorder %s24, 1
        %s426 = scalar_select %p425, %s24, 1
        %p427 = scmp.lt.s32.totalorder %s424, 1
        %s428 = scalar_select %p427, %s424, 1
        %s429 = smul.addr %s426, 2
        %s430 = sadd.s32 %s428, %s429
        %s431 = smul.addr %s430, 4
        %s432 = scalar_lea.vmem %s1, %s431
        %s433 = smul.u32 %s25, 2
        %s434 = ssub.s32 %s433, 1
        %p435 = scmp.gt.s32.totalorder %s434, 0
        %s436 = scalar_select %p435, %s434, 0
        %s437 = sadd.s32 %s25, 1
        %s438 = smul.u32 %s437, 2
        %p439 = scmp.lt.s32.totalorder %s438, 1
        %s440 = scalar_select %p439, %s438, 1
        %p441 = scmp.lt.s32.totalorder %s24, 1
        %s442 = scalar_select %p441, %s24, 1
        %p443 = scmp.lt.s32.totalorder %s440, 1
        %s444 = scalar_select %p443, %s440, 1
        %s445 = smul.addr %s442, 2
        %s446 = sadd.s32 %s444, %s445
        %s447 = smul.addr %s446, 4
        %s448 = scalar_lea.vmem %s2, %s447
        %s449 = sadd.s32 %s25, 1
        %s450 = smul.u32 %s449, 2
        %p451 = scmp.lt.s32.totalorder %s450, 1
        %s452 = scalar_select %p451, %s450, 1
        %s453 = smul.u32 2, %s25
        %p454 = scmp.lt.s32.totalorder %s24, 1
        %s455 = scalar_select %p454, %s24, 1
        %p456 = scmp.lt.s32.totalorder %s453, 1
        %s457 = scalar_select %p456, %s453, 1
        %s458 = smul.addr %s455, 2
        %s459 = sadd.s32 %s457, %s458
        %s460 = smul.addr %s459, 4
        %s461 = scalar_lea.vmem %s6, %s460
        %s462 = smul.u32 2, %s25
        %s463 = sadd.s32 %s24, %s25
        %p464 = scmp.lt.s32.totalorder %s463, 1
        %s465 = scalar_select %p464, %s463, 1
        %s466 = smul.addr %s465, 2
        %s467 = scalar_lea.vmem %s7, %s466
        %s468 = sadd.s32 %s24, %s25
        %s469 = smul.u32 %s25, 16
        %v470 = vld [vmem:[%s419] sm:$0xf]
        %v471 = vld [vmem:[%s419 + $0x4] sm:$0xf]
        %v472 = vunpack.c.l.bf16 %v470
        %v473 = vunpack.c.l.bf16 %v471
        %v474 = vld [vmem:[%s3] sm:$0x1]
        %v476 = vperm.slane %v474, 0
        %v478 = vmul.f32 %v472, %v476
        %v479 = vmul.f32 %v473, %v476
        %v480 = vld [vmem:[%s4] sm:$0x1]
        %v482 = vperm.slane %v480, 0
        %v484 = vadd.f32 %v478, %v482
        %v485 = vadd.f32 %v479, %v482
        %v486 = vmax.f32 %v484, 0.0
        %v487 = vmax.f32 %v485, 0.0
        %v488 = vld [vmem:[%s432] sm:$0xf]
        %v489 = vunpack.c.l.bf16 %v488
        %v490 = vmul.f32 %v489, %v476
        %v491 = vadd.f32 %v490, %v482
        %v492 = vmax.f32 %v491, 0.0
        %v493 = vld [vmem:[%s448] sm:$0xf]
        %v494 = vunpack.c.l.bf16 %v493
        %v495 = vmul.f32 %v494, %v476
        %v496 = vadd.f32 %v495, %v482
        %v497 = vmax.f32 %v496, 0.0
        %v498 = vlaneseq
        %v499 = vshrl.u32 %v498, 7
        %v500 = vadd.s32 %v499, 8
        %v501 = vstv %s469
        %v502 = vadd.s32 %v501, %v499
        %v503 = vadd.s32 %v501, %v500
        %v504 = vrot.slane %v492, 7
        %v505 = vrot.slane %v486, 7
        %v506 = vrot.slane %v487, 7
        %vm507 = vcmp.lt.s32.totalorder %v499, 1
        %v508 = vsel %vm507, %v505, %v506
        %v509 = vsel %vm507, %v504, %v505
        %v510 = vadd.s32 %v502, 4294967295
        %v511 = vadd.s32 %v503, 4294967295
        %vm512 = vcmp.ge.s32.totalorder %v510, 0
        %vm513 = vcmp.ge.s32.totalorder %v511, 0
        %vm514 = vcmp.lt.s32.totalorder %v510, 16
        %vm515 = vcmp.lt.s32.totalorder %v511, 16
        %vm516 = vmand %vm512, %vm514
        %vm517 = vmand %vm513, %vm515
        %v518 = vsel %vm516, 1, 0
        %v519 = vsel %vm517, 1, 0
        %vm520 = vcmp.eq.s32.totalorder %v518, 1
        %vm521 = vcmp.eq.s32.totalorder %v519, 1
        %v522 = vsel %vm520, %v509, 0.0
        %v523 = vsel %vm521, %v508, 0.0
        %vm524 = vcmp.ge.s32.totalorder %v502, 0
        %vm525 = vcmp.ge.s32.totalorder %v503, 0
        %vm526 = vcmp.lt.s32.totalorder %v502, 16
        %vm527 = vcmp.lt.s32.totalorder %v503, 16
        %vm528 = vmand %vm524, %vm526
        %vm529 = vmand %vm525, %vm527
        %v530 = vsel %vm528, 1, 0
        %v531 = vsel %vm529, 1, 0
        %vm532 = vcmp.eq.s32.totalorder %v530, 1
        %vm533 = vcmp.eq.s32.totalorder %v531, 1
        %v534 = vsel %vm532, %v486, 0.0
        %v535 = vsel %vm533, %v487, 0.0
        %v536 = vrot.slane %v486, 1
        %v537 = vrot.slane %v487, 1
        %v538 = vrot.slane %v497, 1
        %vm539 = vcmp.lt.s32.totalorder %v499, 7
        %v540 = vsel %vm539, %v537, %v538
        %v541 = vsel %vm539, %v536, %v537
        %v542 = vadd.s32 %v502, 1
        %v543 = vadd.s32 %v503, 1
        %vm544 = vcmp.ge.s32.totalorder %v542, 0
        %vm545 = vcmp.ge.s32.totalorder %v543, 0
        %vm546 = vcmp.lt.s32.totalorder %v542, 16
        %vm547 = vcmp.lt.s32.totalorder %v543, 16
        %vm548 = vmand %vm544, %vm546
        %vm549 = vmand %vm545, %vm547
        %v550 = vsel %vm548, 1, 0
        %v551 = vsel %vm549, 1, 0
        %vm552 = vcmp.eq.s32.totalorder %v550, 1
        %vm553 = vcmp.eq.s32.totalorder %v551, 1
        %v554 = vsel %vm552, %v541, 0.0
        %v555 = vsel %vm553, %v540, 0.0
        %v556 = vpack.c.bf16 %v523, %v522
        %v557 = vpack.c.bf16 %v535, %v534
        %v558 = vpack.c.bf16 %v555, %v554
        %v559 = vld [vmem:[#allocation2] sm:$0xf]
        %v560 = vld [vmem:[#allocation2 + $0x4] sm:$0xf]
        %v561 = vld [vmem:[#allocation2 + $0x8] sm:$0xf]
        %v562 = vld [vmem:[#allocation2 + $0xc] sm:$0xf]
        %v563 = vld [vmem:[#allocation2 + $0x10] sm:$0xf]
        %v564 = vld [vmem:[#allocation2 + $0x14] sm:$0xf]
        %v565 = vld [vmem:[#allocation2 + $0x18] sm:$0xf]
        %v566 = vld [vmem:[#allocation2 + $0x1c] sm:$0xf]
        %v567 = vld [vmem:[#allocation2 + $0x20] sm:$0xf]
        %v568 = vld [vmem:[#allocation2 + $0x24] sm:$0xf]
        %v569 = vld [vmem:[#allocation2 + $0x28] sm:$0xf]
        %v570 = vld [vmem:[#allocation2 + $0x2c] sm:$0xf]
        %v571 = vld [vmem:[#allocation2 + $0x30] sm:$0xf]
        %v572 = vld [vmem:[#allocation2 + $0x34] sm:$0xf]
        %v573 = vld [vmem:[#allocation2 + $0x38] sm:$0xf]
        %v574 = vld [vmem:[#allocation2 + $0x3c] sm:$0xf]
        %v575 = vld [vmem:[#allocation2 + $0x40] sm:$0xf]
        %v576 = vld [vmem:[#allocation2 + $0x44] sm:$0xf]
        %v577 = vld [vmem:[#allocation2 + $0x48] sm:$0xf]
        %v578 = vld [vmem:[#allocation2 + $0x4c] sm:$0xf]
        %v579 = vld [vmem:[#allocation2 + $0x50] sm:$0xf]
        %v580 = vld [vmem:[#allocation2 + $0x54] sm:$0xf]
        %v581 = vld [vmem:[#allocation2 + $0x58] sm:$0xf]
        %v582 = vld [vmem:[#allocation2 + $0x5c] sm:$0xf]
        %v583 = vld [vmem:[#allocation2 + $0x60] sm:$0xf]
        %v584 = vld [vmem:[#allocation2 + $0x64] sm:$0xf]
        %v585 = vld [vmem:[#allocation2 + $0x68] sm:$0xf]
        %v586 = vld [vmem:[#allocation2 + $0x6c] sm:$0xf]
        %v587 = vld [vmem:[#allocation2 + $0x70] sm:$0xf]
        %v588 = vld [vmem:[#allocation2 + $0x74] sm:$0xf]
        %v589 = vld [vmem:[#allocation2 + $0x78] sm:$0xf]
        %v590 = vld [vmem:[#allocation2 + $0x7c] sm:$0xf]
        %v591 = vld [vmem:[#allocation2 + $0x80] sm:$0xf]
        %v592 = vld [vmem:[#allocation2 + $0x84] sm:$0xf]
        %v593 = vld [vmem:[#allocation2 + $0x88] sm:$0xf]
        %v594 = vld [vmem:[#allocation2 + $0x8c] sm:$0xf]
        %v595 = vld [vmem:[#allocation2 + $0x90] sm:$0xf]
        %v596 = vld [vmem:[#allocation2 + $0x94] sm:$0xf]
        %v597 = vld [vmem:[#allocation2 + $0x98] sm:$0xf]
        %v598 = vld [vmem:[#allocation2 + $0x9c] sm:$0xf]
        %v599 = vld [vmem:[#allocation2 + $0xa0] sm:$0xf]
        %v600 = vld [vmem:[#allocation2 + $0xa4] sm:$0xf]
        %v601 = vld [vmem:[#allocation2 + $0xa8] sm:$0xf]
        %v602 = vld [vmem:[#allocation2 + $0xac] sm:$0xf]
        %v603 = vld [vmem:[#allocation2 + $0xb0] sm:$0xf]
        %v604 = vld [vmem:[#allocation2 + $0xb4] sm:$0xf]
        %v605 = vld [vmem:[#allocation2 + $0xb8] sm:$0xf]
        %v606 = vld [vmem:[#allocation2 + $0xbc] sm:$0xf]
        %v655 = vunpack.c.l.b16 %v559
        %v656 = vunpack.c.l.b16 %v560
        %v657 = vunpack.c.l.b16 %v561
        %v658 = vunpack.c.l.b16 %v562
        %v659 = vunpack.c.l.b16 %v563
        %v660 = vunpack.c.l.b16 %v564
        %v661 = vunpack.c.l.b16 %v565
        %v662 = vunpack.c.l.b16 %v566
        %v663 = vunpack.c.l.b16 %v567
        %v664 = vunpack.c.l.b16 %v568
        %v665 = vunpack.c.l.b16 %v569
        %v666 = vunpack.c.l.b16 %v570
        %v667 = vunpack.c.l.b16 %v571
        %v668 = vunpack.c.l.b16 %v572
        %v669 = vunpack.c.l.b16 %v573
        %v670 = vunpack.c.l.b16 %v574
        %v671 = vunpack.c.l.b16 %v575
        %v672 = vunpack.c.l.b16 %v576
        %v673 = vunpack.c.l.b16 %v577
        %v674 = vunpack.c.l.b16 %v578
        %v675 = vunpack.c.l.b16 %v579
        %v676 = vunpack.c.l.b16 %v580
        %v677 = vunpack.c.l.b16 %v581
        %v678 = vunpack.c.l.b16 %v582
        %v679 = vunpack.c.l.b16 %v583
        %v680 = vunpack.c.l.b16 %v584
        %v681 = vunpack.c.l.b16 %v585
        %v682 = vunpack.c.l.b16 %v586
        %v683 = vunpack.c.l.b16 %v587
        %v684 = vunpack.c.l.b16 %v588
        %v685 = vunpack.c.l.b16 %v589
        %v686 = vunpack.c.l.b16 %v590
        %v687 = vunpack.c.l.b16 %v591
        %v688 = vunpack.c.l.b16 %v592
        %v689 = vunpack.c.l.b16 %v593
        %v690 = vunpack.c.l.b16 %v594
        %v691 = vunpack.c.l.b16 %v595
        %v692 = vunpack.c.l.b16 %v596
        %v693 = vunpack.c.l.b16 %v597
        %v694 = vunpack.c.l.b16 %v598
        %v695 = vunpack.c.l.b16 %v599
        %v696 = vunpack.c.l.b16 %v600
        %v697 = vunpack.c.l.b16 %v601
        %v698 = vunpack.c.l.b16 %v602
        %v699 = vunpack.c.l.b16 %v603
        %v700 = vunpack.c.l.b16 %v604
        %v701 = vunpack.c.l.b16 %v605
        %v702 = vunpack.c.l.b16 %v606
        %v703 = vpack.c.b16 %v656, %v655
        %v704 = vpack.c.b16 %v658, %v657
        %v705 = vpack.c.b16 %v660, %v659
        %v706 = vpack.c.b16 %v662, %v661
        %v707 = vpack.c.b16 %v664, %v663
        %v708 = vpack.c.b16 %v666, %v665
        %v709 = vpack.c.b16 %v668, %v667
        %v710 = vpack.c.b16 %v670, %v669
        %v711 = vpack.c.b16 %v672, %v671
        %v712 = vpack.c.b16 %v674, %v673
        %v713 = vpack.c.b16 %v676, %v675
        %v714 = vpack.c.b16 %v678, %v677
        %v715 = vpack.c.b16 %v680, %v679
        %v716 = vpack.c.b16 %v682, %v681
        %v717 = vpack.c.b16 %v684, %v683
        %v718 = vpack.c.b16 %v686, %v685
        %v719 = vpack.c.b16 %v688, %v687
        %v720 = vpack.c.b16 %v690, %v689
        %v721 = vpack.c.b16 %v692, %v691
        %v722 = vpack.c.b16 %v694, %v693
        %v723 = vpack.c.b16 %v696, %v695
        %v724 = vpack.c.b16 %v698, %v697
        %v725 = vpack.c.b16 %v700, %v699
        %v726 = vpack.c.b16 %v702, %v701
        %751 = vmatpush.bf16.msra.mxu0 %v710
        %752 = vmatpush.bf16.msra.mxu0 %v709
        %753 = vmatpush.bf16.msra.mxu0 %v708
        %754 = vmatpush.bf16.msra.mxu0 %v707
        %755 = vmatpush.bf16.msra.mxu0 %v706
        %756 = vmatpush.bf16.msra.mxu0 %v705
        %757 = vmatpush.bf16.msra.mxu0 %v704
        %758 = vmatpush.bf16.msra.mxu0 %v703
        %759 = vmatmul.bf16.gmra.mxu0 %v556
        %v760 = vpop.f32.mrf.mxu0
        %v761 = vadd.f32 0.0, %v760
        %v762 = vpop.f32.mrf.mxu0
        %v763 = vadd.f32 0.0, %v762
        %764 = vdwg.mxu0
        %765 = vmatpush.bf16.msra.mxu0 %v718
        %766 = vmatpush.bf16.msra.mxu0 %v717
        %767 = vmatpush.bf16.msra.mxu0 %v716
        %768 = vmatpush.bf16.msra.mxu0 %v715
        %769 = vmatpush.bf16.msra.mxu0 %v714
        %770 = vmatpush.bf16.msra.mxu0 %v713
        %771 = vmatpush.bf16.msra.mxu0 %v712
        %772 = vmatpush.bf16.msra.mxu0 %v711
        %773 = vmatmul.bf16.gmra.mxu0 %v557
        %v774 = vpop.f32.mrf.mxu0
        %v775 = vadd.f32 %v761, %v774
        %v776 = vpop.f32.mrf.mxu0
        %v777 = vadd.f32 %v763, %v776
        %778 = vdwg.mxu0
        %779 = vmatpush.bf16.msra.mxu0 %v726
        %780 = vmatpush.bf16.msra.mxu0 %v725
        %781 = vmatpush.bf16.msra.mxu0 %v724
        %782 = vmatpush.bf16.msra.mxu0 %v723
        %783 = vmatpush.bf16.msra.mxu0 %v722
        %784 = vmatpush.bf16.msra.mxu0 %v721
        %785 = vmatpush.bf16.msra.mxu0 %v720
        %786 = vmatpush.bf16.msra.mxu0 %v719
        %787 = vmatmul.bf16.gmra.mxu0 %v558
        %v788 = vpop.f32.mrf.mxu0
        %v789 = vadd.f32 %v775, %v788
        %v790 = vpop.f32.mrf.mxu0
        %v791 = vadd.f32 %v777, %v790
        %792 = vdwg.mxu0
        %v793 = vadd.f32 %v789, %v791
        %v794 = vrot.slane %v793, 4
        %v795 = vadd.f32 %v793, %v794
        %v796 = vrot.slane %v795, 2
        %v797 = vadd.f32 %v795, %v796
        %v798 = vrot.slane %v797, 1
        %v799 = vadd.f32 %v797, %v798
        %800 = vst [vmem:[%s467] sm:$0x1] %v799
        %v801 = vmul.f32 %v789, %v789
        %v802 = vmul.f32 %v791, %v791
        %v803 = vadd.f32 %v801, %v802
        %v804 = vrot.slane %v803, 4
        %v805 = vadd.f32 %v803, %v804
        %v806 = vrot.slane %v805, 2
        %v807 = vadd.f32 %v805, %v806
        %v808 = vrot.slane %v807, 1
        %v809 = vadd.f32 %v807, %v808
        %810 = vst [vmem:[%s467 + $0x1] sm:$0x1] %v809
        %v811 = vpack.c.bf16 %v789, %v789
        %v812 = vpack.c.bf16 %v791, %v791
        %813 = vst [vmem:[%s461] sm:$0xf] %v811
        %814 = vst [vmem:[%s461 + $0x4] sm:$0xf] %v812
        %s815 = smul.u32 2, %s25
        %p816 = scmp.lt.s32.totalorder %s24, 1
        %s817 = scalar_select %p816, %s24, 1
        %p818 = scmp.lt.s32.totalorder %s815, 1
        %s819 = scalar_select %p818, %s815, 1
        %s820 = smul.addr %s817, 2
        %s821 = sadd.s32 %s819, %s820
        %s822 = smul.addr %s821, 4
        %s823 = scalar_lea.vmem %s6, %s822
        %s824 = sadd.s32 %s24, %s25
        %p825 = scmp.lt.s32.totalorder %s824, 1
        %s826 = scalar_select %p825, %s824, 1
        %s827 = smul.addr %s826, 2
        %s828 = scalar_lea.vmem %s7, %s827
        // Predicated region
        $region49: #{bottleneck1d.5} parent=43 // pred_check
          %p829 = pneg %p215
        $region50: #{bottleneck1d.5} parent=43 // pred_check_branch
          %831 = sbr.rel (%p829) target = $region52
        $region51: #{bottleneck1d.5} parent=43 // pred_region
          %s832 = smul.u32 2, %s25
        $region52: #{bottleneck1d.5} parent=43 // pred_fallthru
          _
        // Predicated region
        $region53: #{bottleneck1d.5} parent=43 // pred_check
          %p833 = pneg %p243
        $region54: #{bottleneck1d.5} parent=43 // pred_check_branch
          %835 = sbr.rel (%p833) target = $region56
        $region55: #{bottleneck1d.5} parent=43 // pred_region
          %s836 = sadd.s32 %s24, %s25
        $region56: #{bottleneck1d.5} parent=43 // pred_fallthru
          _
      $region44: #{bottleneck1d.5} parent=5 // pred_fallthru
        _
      %p837 = scmp.le.s32.totalorder 2, %s15
      // Predicated region
      $region57: #{bottleneck1d.5} parent=5 // pred_check
        %p838 = pneg %p837
      $region58: #{bottleneck1d.5} parent=5 // pred_check_branch
        %840 = sbr.rel (%p838) target = $region60
      $region59: #{bottleneck1d.5} parent=5 // pred_region
        %s841 = ssub.s32 %s15, 2
        // Predicated region
        $region61: #{bottleneck1d.5} parent=59 // pred_check
          %p842 = pneg %p221
        $region62: #{bottleneck1d.5} parent=59 // pred_check_branch
          %844 = sbr.rel (%p842) target = $region64
        $region63: #{bottleneck1d.5} parent=59 // pred_region
          %s845 = smul.u32 2, %s27
          %p846 = scmp.lt.s32.totalorder %s26, 1
          %s847 = scalar_select %p846, %s26, 1
          %p848 = scmp.lt.s32.totalorder %s845, 1
          %s849 = scalar_select %p848, %s845, 1
          %s850 = smul.addr %s847, 2
          %s851 = sadd.s32 %s849, %s850
          %s852 = smul.addr %s851, 4
          %s853 = scalar_lea.vmem %s6, %s852
        $region64: #{bottleneck1d.5} parent=59 // pred_fallthru
          _
        // Predicated region
        $region65: #{bottleneck1d.5} parent=59 // pred_check
          %p854 = pneg %p249
        $region66: #{bottleneck1d.5} parent=59 // pred_check_branch
          %856 = sbr.rel (%p854) target = $region68
        $region67: #{bottleneck1d.5} parent=59 // pred_region
          %s857 = sadd.s32 %s26, %s27
          %p858 = scmp.lt.s32.totalorder %s857, 1
          %s859 = scalar_select %p858, %s857, 1
          %s860 = smul.addr %s859, 2
          %s861 = scalar_lea.vmem %s7, %s860
        $region68: #{bottleneck1d.5} parent=59 // pred_fallthru
          _
      $region60: #{bottleneck1d.5} parent=5 // pred_fallthru
        _
    $region6: #{bottleneck1d.5} parent=1 // loop_footer
      %s19 = sadd.s32 1, %s15
    $region7: #{bottleneck1d.5} parent=1 // loop_footer_branch
      %14 = sbr.rel target = $region3
    $region8: #{bottleneck1d.5} parent=1 // loop_exit
      _
    %862 = vsyncpa [#allocation3], 1
    %s863 = scalar_lea.sflag [#allocation3], 1
    %864 = vsyncpa %s863, 1

</llo_original>
